<compile_context>
chip_gen: v7x
topology: tpu7x:2x2x1
jax: 0.10.0
libtpu: 0.0.40
codegen_flags: <defaults>
</compile_context>

<pallas_src>
import functools

import jax
import jax.numpy as jnp
from jax.experimental import pallas as pl
from jax.experimental.pallas import tpu as pltpu


def _pad_rows_cols(v, row_pad, col_pad):
    """Zero-pad axes 0 (rows) and 1 (cols) of a rank-3 (rows, cols, C) value."""
    def _pad_axis(v, ax, lo, hi):
        parts = []
        if lo:
            shp = list(v.shape)
            shp[ax] = lo
            parts.append(jnp.zeros(shp, v.dtype))
        parts.append(v)
        if hi:
            shp = list(v.shape)
            shp[ax] = hi
            parts.append(jnp.zeros(shp, v.dtype))
        return jnp.concatenate(parts, axis=ax) if len(parts) > 1 else v

    v = _pad_axis(v, 0, *row_pad)
    v = _pad_axis(v, 1, *col_pad)
    return v


def _im2col_3x3(xp, out_rows, W, C, compute_dtype):
    """xp: (out_rows+2, W+2, C) padded value -> (out_rows*W, 9*C) im2col LHS.

    Tap order (dy, dx, cin) matches the (9*C, C) fused weight layout.
    """
    taps = [xp[dy:dy + out_rows, dx:dx + W, :].reshape(out_rows * W, C)
            for dy in range(3) for dx in range(3)]
    return jnp.concatenate(taps, axis=-1).astype(compute_dtype)


def _resblock_kernel(x_ref, w1_ref, b1_ref, w2_ref, b2_ref, o_ref, *,
                     band_rows, compute_dtype):
    # x_ref : (1, H, W, C)  un-padded NHWC input for one batch element
    # w*_ref: (9*C, C)      tap-fused conv weights (bf16), row order (dy, dx, cin)
    # b*_ref: (1, C)        biases (f32)
    # o_ref : (1, H, W, C)  output
    _, H, W, C = x_ref.shape
    bh = band_rows
    n_bands = H // bh

    # Hoist weight / bias loads out of the band loop.
    w1 = w1_ref[...]
    w2 = w2_ref[...]
    b1 = b1_ref[...].astype(jnp.float32)
    b2 = b2_ref[...].astype(jnp.float32)

    for b in range(n_bands):  # static band loop: all slice bounds are Python ints
        r0, r1 = b * bh, (b + 1) * bh

        # conv2 on rows [r0, r1) needs conv1 outputs on rows [r0-1, r1+1); rows
        # outside [0, H) are the zero padding of the intermediate activation.
        yh0, yh1 = max(r0 - 1, 0), min(r1 + 1, H)
        nh = yh1 - yh0
        # conv1 on rows [yh0, yh1) needs input rows [yh0-1, yh1+1) clipped to image.
        xi0, xi1 = max(yh0 - 1, 0), min(yh1 + 1, H)

        # Single band read: reused for the conv1 im2col (bf16) and the identity (f32).
        xb = x_ref[0, xi0:xi1, :, :]

        # Padded conv1 input band: rows [yh0-1, yh1+1), cols [-1, W+1).
        xp = _pad_rows_cols(xb.astype(compute_dtype),
                            (xi0 - (yh0 - 1), (yh1 + 1) - xi1), (1, 1))

        # ---- conv1 (+ bias, ReLU): one fused-K MXU dot ------------------------
        lhs1 = _im2col_3x3(xp, nh, W, C, compute_dtype)            # (nh*W, 9C)
        y1 = jnp.dot(lhs1, w1, preferred_element_type=jnp.float32) + b1
        y1 = jnp.maximum(y1, 0.0).astype(compute_dtype).reshape(nh, W, C)

        # Padded conv1 output (intermediate activation): rows [r0-1, r1+1), cols [-1, W+1).
        y1p = _pad_rows_cols(y1, (yh0 - (r0 - 1), (r1 + 1) - yh1), (1, 1))

        # ---- conv2 (+ bias) + residual add ------------------------------------
        lhs2 = _im2col_3x3(y1p, bh, W, C, compute_dtype)           # (bh*W, 9C)
        y2 = jnp.dot(lhs2, w2, preferred_element_type=jnp.float32) + b2

        identity = xb[r0 - xi0:r1 - xi0, :, :].astype(jnp.float32).reshape(bh * W, C)
        o_ref[0, r0:r1, :, :] = (identity + y2).reshape(bh, W, C).astype(o_ref.dtype)


def residual_block_nobn_nhwc(x_nhwc, w1_hwio, b1, w2_hwio, b2,
                             band_rows=None, compute_dtype=jnp.bfloat16):
    """x_nhwc: (N, H, W, C) f32.  w*_hwio: (3, 3, C, C).  b*: (C,)."""
    N, H, W, C = x_nhwc.shape

    if band_rows is None:
        # Largest divisor of H keeping the im2col LHS at <= ~256 rows per band
        # (matches the 256-wide MXU on v6e/v7x, minimizes halo recompute).
        band_rows = 1
        for d in range(1, H + 1):
            if H % d == 0 and d * W <= 256:
                band_rows = d
    assert H % band_rows == 0

    # Fuse the 9 taps into the contraction dim: (3,3,Cin,Cout) -> (9*Cin, Cout).
    # Row order (dy, dx, cin) matches the in-kernel tap concatenation order.
    w1f = w1_hwio.reshape(9 * C, C).astype(compute_dtype)
    w2f = w2_hwio.reshape(9 * C, C).astype(compute_dtype)
    b1_2d = b1.reshape(1, C).astype(jnp.float32)
    b2_2d = b2.reshape(1, C).astype(jnp.float32)

    kernel = functools.partial(_resblock_kernel, band_rows=band_rows,
                               compute_dtype=compute_dtype)

    return pl.pallas_call(
        kernel,
        out_shape=jax.ShapeDtypeStruct((N, H, W, C), x_nhwc.dtype),
        grid_spec=pltpu.PrefetchScalarGridSpec(
            num_scalar_prefetch=0,
            grid=(N,),  # one grid step per batch element (both TCs used for N>=2)
            in_specs=[
                pl.BlockSpec((1, H, W, C), lambda n: (n, 0, 0, 0)),
                pl.BlockSpec((9 * C, C), lambda n: (0, 0)),
                pl.BlockSpec((1, C), lambda n: (0, 0)),
                pl.BlockSpec((9 * C, C), lambda n: (0, 0)),
                pl.BlockSpec((1, C), lambda n: (0, 0)),
            ],
            out_specs=pl.BlockSpec((1, H, W, C), lambda n: (n, 0, 0, 0)),
        ),
        compiler_params=pltpu.CompilerParams(
            dimension_semantics=("parallel",)),
    )(x_nhwc, w1f, b1_2d, w2f, b2_2d)


def _reference_nhwc(x_nhwc, w1_hwio, b1, w2_hwio, b2):
    """Pure-JAX f32 reference (matches F.conv2d semantics)."""
    dn = ("NHWC", "HWIO", "NHWC")
    conv = lambda x, w: jax.lax.conv_general_dilated(
        x, w, window_strides=(1, 1), padding="SAME", dimension_numbers=dn)
    out = jax.nn.relu(conv(x_nhwc, w1_hwio) + b1)
    out = conv(out, w2_hwio) + b2
    return x_nhwc + out


if __name__ == "__main__":
    # Small shapes consistent with the module: batch=2, nf(channels)=4, spatial=16.
    N, C, H, W = 2, 4, 16, 16

    key = jax.random.PRNGKey(0)
    kx, kw1, kb1, kw2, kb2 = jax.random.split(key, 5)

    # Input in PyTorch NCHW convention, converted to NHWC for the kernel.
    x_nchw = jax.random.normal(kx, (N, C, H, W), dtype=jnp.float32)
    x_nhwc = jnp.transpose(x_nchw, (0, 2, 3, 1))

    # Mimic arch_util.initialize_weights scale 0.1; small non-zero biases to
    # exercise the bias path.
    w1_oihw = 0.1 * jax.random.normal(kw1, (C, C, 3, 3), dtype=jnp.float32)
    w2_oihw = 0.1 * jax.random.normal(kw2, (C, C, 3, 3), dtype=jnp.float32)
    b1 = 0.01 * jax.random.normal(kb1, (C,), dtype=jnp.float32)
    b2 = 0.01 * jax.random.normal(kb2, (C,), dtype=jnp.float32)

    # PyTorch OIHW -> HWIO for the NHWC kernel.
    w1_hwio = jnp.transpose(w1_oihw, (2, 3, 1, 0))
    w2_hwio = jnp.transpose(w2_oihw, (2, 3, 1, 0))

    out_nhwc = residual_block_nobn_nhwc(x_nhwc, w1_hwio, b1, w2_hwio, b2)
    out_nhwc = jax.block_until_ready(out_nhwc)

    # Verify against the f32 reference (matmul operands are bf16, hence the
    # slightly looser tolerance; accumulation stays f32).
    ref_nhwc = _reference_nhwc(x_nhwc, w1_hwio, b1, w2_hwio, b2)
    assert jnp.allclose(out_nhwc, ref_nhwc, rtol=2e-2, atol=2e-2), "mismatch vs reference"

    # Back to NCHW (PyTorch output convention).
    out_nchw = jnp.transpose(out_nhwc, (0, 3, 1, 2))
    jax.block_until_ready(out_nchw)

    print("KERNEL_OK")
</pallas_src>

<mosaic_0001>
module attributes {stable_mosaic.version = 11 : i64} {
  func.func @_resblock_kernel(%arg0: i32, %arg1: memref<1x16x16x4xf32, #tpu.memory_space<vmem>>, %arg2: memref<36x4xbf16, #tpu.memory_space<vmem>>, %arg3: memref<1x4xf32, #tpu.memory_space<vmem>>, %arg4: memref<36x4xbf16, #tpu.memory_space<vmem>>, %arg5: memref<1x4xf32, #tpu.memory_space<vmem>>, %arg6: memref<1x16x16x4xf32, #tpu.memory_space<vmem>>) attributes {dimension_semantics = [#tpu.dimension_semantics<parallel>], iteration_bounds = array<i64: 2>, scalar_prefetch = 0 : i64, scratch_operands = 0 : i64, tpu.core_type = #tpu.core_type<tc>, window_params = [{transform_indices = @transform_0, window_bounds = array<i64: 1, 16, 16, 4>}, {pipeline_mode = #tpu.pipeline_mode<synchronous>, transform_indices = @transform_1, window_bounds = array<i64: 36, 4>}, {pipeline_mode = #tpu.pipeline_mode<synchronous>, transform_indices = @transform_2, window_bounds = array<i64: 1, 4>}, {pipeline_mode = #tpu.pipeline_mode<synchronous>, transform_indices = @transform_3, window_bounds = array<i64: 36, 4>}, {pipeline_mode = #tpu.pipeline_mode<synchronous>, transform_indices = @transform_4, window_bounds = array<i64: 1, 4>}, {transform_indices = @transform_5, window_bounds = array<i64: 1, 16, 16, 4>}]} {
    %c0 = arith.constant 0 : index
    %c0_0 = arith.constant 0 : index
    %0 = vector.load %arg2[%c0, %c0_0] : memref<36x4xbf16, #tpu.memory_space<vmem>>, vector<36x4xbf16>
    %c0_1 = arith.constant 0 : index
    %c0_2 = arith.constant 0 : index
    %1 = vector.load %arg4[%c0_1, %c0_2] : memref<36x4xbf16, #tpu.memory_space<vmem>>, vector<36x4xbf16>
    %c0_3 = arith.constant 0 : index
    %c0_4 = arith.constant 0 : index
    %2 = vector.load %arg3[%c0_3, %c0_4] : memref<1x4xf32, #tpu.memory_space<vmem>>, vector<1x4xf32>
    %c0_5 = arith.constant 0 : index
    %c0_6 = arith.constant 0 : index
    %3 = vector.load %arg5[%c0_5, %c0_6] : memref<1x4xf32, #tpu.memory_space<vmem>>, vector<1x4xf32>
    %c0_7 = arith.constant 0 : index
    %c0_8 = arith.constant 0 : index
    %c0_9 = arith.constant 0 : index
    %c0_10 = arith.constant 0 : index
    %4 = vector.load %arg1[%c0_7, %c0_8, %c0_9, %c0_10] : memref<1x16x16x4xf32, #tpu.memory_space<vmem>>, vector<1x16x16x4xf32>
    %5 = vector.shape_cast %4 : vector<1x16x16x4xf32> to vector<16x16x4xf32>
    %6 = arith.truncf %5 : vector<16x16x4xf32> to vector<16x16x4xbf16>
    %cst = arith.constant 0.000000e+00 : bf16
    %7 = vector.broadcast %cst : bf16 to vector<1x16x4xbf16>
    %cst_11 = arith.constant 0.000000e+00 : bf16
    %8 = vector.broadcast %cst_11 : bf16 to vector<1x16x4xbf16>
    %9 = tpu.concatenate %7, %6, %8 in 0 : vector<1x16x4xbf16>, vector<16x16x4xbf16>, vector<1x16x4xbf16> -> vector<18x16x4xbf16>
    %cst_12 = arith.constant 0.000000e+00 : bf16
    %10 = vector.broadcast %cst_12 : bf16 to vector<18x1x4xbf16>
    %cst_13 = arith.constant 0.000000e+00 : bf16
    %11 = vector.broadcast %cst_13 : bf16 to vector<18x1x4xbf16>
    %12 = tpu.concatenate %10, %9, %11 in 1 : vector<18x1x4xbf16>, vector<18x16x4xbf16>, vector<18x1x4xbf16> -> vector<18x18x4xbf16>
    %13 = vector.extract_strided_slice %12 {offsets = [0, 0, 0], sizes = [16, 16, 4], strides = [1, 1, 1]} : vector<18x18x4xbf16> to vector<16x16x4xbf16>
    %14 = vector.shape_cast %13 : vector<16x16x4xbf16> to vector<256x4xbf16>
    %15 = vector.extract_strided_slice %12 {offsets = [0, 1, 0], sizes = [16, 16, 4], strides = [1, 1, 1]} : vector<18x18x4xbf16> to vector<16x16x4xbf16>
    %16 = vector.shape_cast %15 : vector<16x16x4xbf16> to vector<256x4xbf16>
    %17 = vector.extract_strided_slice %12 {offsets = [0, 2, 0], sizes = [16, 16, 4], strides = [1, 1, 1]} : vector<18x18x4xbf16> to vector<16x16x4xbf16>
    %18 = vector.shape_cast %17 : vector<16x16x4xbf16> to vector<256x4xbf16>
    %19 = vector.extract_strided_slice %12 {offsets = [1, 0, 0], sizes = [16, 16, 4], strides = [1, 1, 1]} : vector<18x18x4xbf16> to vector<16x16x4xbf16>
    %20 = vector.shape_cast %19 : vector<16x16x4xbf16> to vector<256x4xbf16>
    %21 = vector.extract_strided_slice %12 {offsets = [1, 1, 0], sizes = [16, 16, 4], strides = [1, 1, 1]} : vector<18x18x4xbf16> to vector<16x16x4xbf16>
    %22 = vector.shape_cast %21 : vector<16x16x4xbf16> to vector<256x4xbf16>
    %23 = vector.extract_strided_slice %12 {offsets = [1, 2, 0], sizes = [16, 16, 4], strides = [1, 1, 1]} : vector<18x18x4xbf16> to vector<16x16x4xbf16>
    %24 = vector.shape_cast %23 : vector<16x16x4xbf16> to vector<256x4xbf16>
    %25 = vector.extract_strided_slice %12 {offsets = [2, 0, 0], sizes = [16, 16, 4], strides = [1, 1, 1]} : vector<18x18x4xbf16> to vector<16x16x4xbf16>
    %26 = vector.shape_cast %25 : vector<16x16x4xbf16> to vector<256x4xbf16>
    %27 = vector.extract_strided_slice %12 {offsets = [2, 1, 0], sizes = [16, 16, 4], strides = [1, 1, 1]} : vector<18x18x4xbf16> to vector<16x16x4xbf16>
    %28 = vector.shape_cast %27 : vector<16x16x4xbf16> to vector<256x4xbf16>
    %29 = vector.extract_strided_slice %12 {offsets = [2, 2, 0], sizes = [16, 16, 4], strides = [1, 1, 1]} : vector<18x18x4xbf16> to vector<16x16x4xbf16>
    %30 = vector.shape_cast %29 : vector<16x16x4xbf16> to vector<256x4xbf16>
    %31 = tpu.concatenate %14, %16, %18, %20, %22, %24, %26, %28, %30 in 1 : vector<256x4xbf16>, vector<256x4xbf16>, vector<256x4xbf16>, vector<256x4xbf16>, vector<256x4xbf16>, vector<256x4xbf16>, vector<256x4xbf16>, vector<256x4xbf16>, vector<256x4xbf16> -> vector<256x36xbf16>
    %cst_14 = arith.constant dense<0.000000e+00> : vector<256x4xf32>
    %32 = tpu.matmul %31, %0, %cst_14 {dimension_numbers = #tpu.dot_dimension_numbers<[1], [0], [0], [1], [0, 0, 1, 1], [], []>} : vector<256x36xbf16>, vector<36x4xbf16>, vector<256x4xf32> -> vector<256x4xf32>
    %33 = vector.broadcast %2 : vector<1x4xf32> to vector<256x4xf32>
    %34 = arith.addf %32, %33 : vector<256x4xf32>
    %cst_15 = arith.constant 0.000000e+00 : f32
    %35 = vector.broadcast %cst_15 : f32 to vector<256x4xf32>
    %36 = arith.maximumf %34, %35 : vector<256x4xf32>
    %37 = arith.truncf %36 : vector<256x4xf32> to vector<256x4xbf16>
    %38 = vector.shape_cast %37 : vector<256x4xbf16> to vector<16x16x4xbf16>
    %cst_16 = arith.constant 0.000000e+00 : bf16
    %39 = vector.broadcast %cst_16 : bf16 to vector<1x16x4xbf16>
    %cst_17 = arith.constant 0.000000e+00 : bf16
    %40 = vector.broadcast %cst_17 : bf16 to vector<1x16x4xbf16>
    %41 = tpu.concatenate %39, %38, %40 in 0 : vector<1x16x4xbf16>, vector<16x16x4xbf16>, vector<1x16x4xbf16> -> vector<18x16x4xbf16>
    %cst_18 = arith.constant 0.000000e+00 : bf16
    %42 = vector.broadcast %cst_18 : bf16 to vector<18x1x4xbf16>
    %cst_19 = arith.constant 0.000000e+00 : bf16
    %43 = vector.broadcast %cst_19 : bf16 to vector<18x1x4xbf16>
    %44 = tpu.concatenate %42, %41, %43 in 1 : vector<18x1x4xbf16>, vector<18x16x4xbf16>, vector<18x1x4xbf16> -> vector<18x18x4xbf16>
    %45 = vector.extract_strided_slice %44 {offsets = [0, 0, 0], sizes = [16, 16, 4], strides = [1, 1, 1]} : vector<18x18x4xbf16> to vector<16x16x4xbf16>
    %46 = vector.shape_cast %45 : vector<16x16x4xbf16> to vector<256x4xbf16>
    %47 = vector.extract_strided_slice %44 {offsets = [0, 1, 0], sizes = [16, 16, 4], strides = [1, 1, 1]} : vector<18x18x4xbf16> to vector<16x16x4xbf16>
    %48 = vector.shape_cast %47 : vector<16x16x4xbf16> to vector<256x4xbf16>
    %49 = vector.extract_strided_slice %44 {offsets = [0, 2, 0], sizes = [16, 16, 4], strides = [1, 1, 1]} : vector<18x18x4xbf16> to vector<16x16x4xbf16>
    %50 = vector.shape_cast %49 : vector<16x16x4xbf16> to vector<256x4xbf16>
    %51 = vector.extract_strided_slice %44 {offsets = [1, 0, 0], sizes = [16, 16, 4], strides = [1, 1, 1]} : vector<18x18x4xbf16> to vector<16x16x4xbf16>
    %52 = vector.shape_cast %51 : vector<16x16x4xbf16> to vector<256x4xbf16>
    %53 = vector.extract_strided_slice %44 {offsets = [1, 1, 0], sizes = [16, 16, 4], strides = [1, 1, 1]} : vector<18x18x4xbf16> to vector<16x16x4xbf16>
    %54 = vector.shape_cast %53 : vector<16x16x4xbf16> to vector<256x4xbf16>
    %55 = vector.extract_strided_slice %44 {offsets = [1, 2, 0], sizes = [16, 16, 4], strides = [1, 1, 1]} : vector<18x18x4xbf16> to vector<16x16x4xbf16>
    %56 = vector.shape_cast %55 : vector<16x16x4xbf16> to vector<256x4xbf16>
    %57 = vector.extract_strided_slice %44 {offsets = [2, 0, 0], sizes = [16, 16, 4], strides = [1, 1, 1]} : vector<18x18x4xbf16> to vector<16x16x4xbf16>
    %58 = vector.shape_cast %57 : vector<16x16x4xbf16> to vector<256x4xbf16>
    %59 = vector.extract_strided_slice %44 {offsets = [2, 1, 0], sizes = [16, 16, 4], strides = [1, 1, 1]} : vector<18x18x4xbf16> to vector<16x16x4xbf16>
    %60 = vector.shape_cast %59 : vector<16x16x4xbf16> to vector<256x4xbf16>
    %61 = vector.extract_strided_slice %44 {offsets = [2, 2, 0], sizes = [16, 16, 4], strides = [1, 1, 1]} : vector<18x18x4xbf16> to vector<16x16x4xbf16>
    %62 = vector.shape_cast %61 : vector<16x16x4xbf16> to vector<256x4xbf16>
    %63 = tpu.concatenate %46, %48, %50, %52, %54, %56, %58, %60, %62 in 1 : vector<256x4xbf16>, vector<256x4xbf16>, vector<256x4xbf16>, vector<256x4xbf16>, vector<256x4xbf16>, vector<256x4xbf16>, vector<256x4xbf16>, vector<256x4xbf16>, vector<256x4xbf16> -> vector<256x36xbf16>
    %cst_20 = arith.constant dense<0.000000e+00> : vector<256x4xf32>
    %64 = tpu.matmul %63, %1, %cst_20 {dimension_numbers = #tpu.dot_dimension_numbers<[1], [0], [0], [1], [0, 0, 1, 1], [], []>} : vector<256x36xbf16>, vector<36x4xbf16>, vector<256x4xf32> -> vector<256x4xf32>
    %65 = vector.broadcast %3 : vector<1x4xf32> to vector<256x4xf32>
    %66 = arith.addf %64, %65 : vector<256x4xf32>
    %67 = vector.shape_cast %5 : vector<16x16x4xf32> to vector<256x4xf32>
    %68 = arith.addf %67, %66 : vector<256x4xf32>
    %69 = vector.shape_cast %68 : vector<256x4xf32> to vector<16x16x4xf32>
    %c0_21 = arith.constant 0 : index
    %c0_22 = arith.constant 0 : index
    %c0_23 = arith.constant 0 : index
    %c0_24 = arith.constant 0 : index
    %70 = vector.load %arg6[%c0_21, %c0_22, %c0_23, %c0_24] : memref<1x16x16x4xf32, #tpu.memory_space<vmem>>, vector<1x16x16x4xf32>
    %71 = vector.shape_cast %70 : vector<1x16x16x4xf32> to vector<16x16x4xf32>
    %72 = vector.shape_cast %69 : vector<16x16x4xf32> to vector<1x16x16x4xf32>
    tpu.vector_store %arg6[%c0_21, %c0_22, %c0_23, %c0_24], %72 {strides = array<i32>} : memref<1x16x16x4xf32, #tpu.memory_space<vmem>>, vector<1x16x16x4xf32>,
    return
  }
  func.func @transform_0(%arg0: i32) -> (i32, i32, i32, i32) {
    %c0_i32 = arith.constant 0 : i32
    %c0_i32_0 = arith.constant 0 : i32
    %c0_i32_1 = arith.constant 0 : i32
    %c0_i32_2 = arith.constant 0 : i32
    return %arg0, %c0_i32, %c0_i32_0, %c0_i32_1 : i32, i32, i32, i32
  }
  func.func @transform_1(%arg0: i32) -> (i32, i32) {
    %c0_i32 = arith.constant 0 : i32
    %c0_i32_0 = arith.constant 0 : i32
    %c0_i32_1 = arith.constant 0 : i32
    return %c0_i32, %c0_i32_0 : i32, i32
  }
  func.func @transform_2(%arg0: i32) -> (i32, i32) {
    %c0_i32 = arith.constant 0 : i32
    %c0_i32_0 = arith.constant 0 : i32
    %c0_i32_1 = arith.constant 0 : i32
    return %c0_i32, %c0_i32_0 : i32, i32
  }
  func.func @transform_3(%arg0: i32) -> (i32, i32) {
    %c0_i32 = arith.constant 0 : i32
    %c0_i32_0 = arith.constant 0 : i32
    %c0_i32_1 = arith.constant 0 : i32
    return %c0_i32, %c0_i32_0 : i32, i32
  }
  func.func @transform_4(%arg0: i32) -> (i32, i32) {
    %c0_i32 = arith.constant 0 : i32
    %c0_i32_0 = arith.constant 0 : i32
    %c0_i32_1 = arith.constant 0 : i32
    return %c0_i32, %c0_i32_0 : i32, i32
  }
  func.func @transform_5(%arg0: i32) -> (i32, i32, i32, i32) {
    %c0_i32 = arith.constant 0 : i32
    %c0_i32_0 = arith.constant 0 : i32
    %c0_i32_1 = arith.constant 0 : i32
    %c0_i32_2 = arith.constant 0 : i32
    return %arg0, %c0_i32, %c0_i32_0, %c0_i32_1 : i32, i32, i32, i32
  }
}

</mosaic_0001>

<llo_original>
// kernel: tpu_custom_call.1
$region0: #{tpu_custom_call.1}
  #allocation0 [shape = 'u32[]', space=smem, size = 0x4, offset = 0x4, fixed_abs, tag = 'smem constant byte address 0x4 - core index']
  #allocation1 [shape = 'u32[144,128]{1,0:T(1,128)}', space=vmem, size = 0x12000, scoped, tag = 'internal scratch']
  %s0 = inlined_call_operand.vmem [shape: f32[2,16,16,4], index: 0, kind: input, shape index: {}]
  %s1 = inlined_call_operand.vmem [shape: bf16[36,4], index: 1, kind: input, shape index: {}]
  %s2 = inlined_call_operand.vmem [shape: f32[1,4], index: 2, kind: input, shape index: {}]
  %s3 = inlined_call_operand.vmem [shape: bf16[36,4], index: 3, kind: input, shape index: {}]
  %s4 = inlined_call_operand.vmem [shape: f32[1,4], index: 4, kind: input, shape index: {}]
  %s5 = inlined_call_operand.vmem [shape: f32[2,16,16,4], index: 5, kind: output, shape index: {}]
  %s6 = sld [smem:[#allocation0]]
  $region53: #{tpu_custom_call.1} parent=0
    _
  %s8 = ssub.s32 1, %s6
  %s9 = scalar_select 0, %s8, %s6
  loop: start=0, step=1, limit=4
  $region2: #{tpu_custom_call.1} parent=0 // loop_pre_header
    _
  $region3: #{tpu_custom_call.1} parent=0 // loop_header
    %s11 = sphi 0, %s15
    %p12 = scmp.ge.s32.totalorder %s11, 4
    %s21 = sphi 0, %s23
    %s24 = sphi 0, %s21
    %s25 = sphi 0, %s24
    %s41 = sphi 0, %s25
    %s45 = sphi 0, %s45
    %s47 = sphi 0, %s45
    %s48 = sphi 0, %s47
    %s62 = sphi 0, %s48
    %s66 = sphi 0, %s66
    %s68 = sphi 0, %s66
    %s69 = sphi 0, %s68
    %s83 = sphi 0, %s69
    %s87 = sphi 0, %s87
    %s89 = sphi 0, %s87
    %s90 = sphi 0, %s89
    %s104 = sphi 0, %s90
    %s108 = sphi 0, %s108
    %s110 = sphi 0, %s108
    %s111 = sphi 0, %s110
    %s125 = sphi 0, %s111
    %s131 = sphi 0, %s133
    %s134 = sphi 0, %s131
    %s135 = sphi 0, %s134
    %s151 = sphi 0, %s135
  $region4: #{tpu_custom_call.1} parent=0 // loop_header_branch
    %14 = sbr.rel (%p12) target = $region8
  $region5: #{tpu_custom_call.1} parent=0 // loop_body
    %s16 = ssub.s32 %s11, 1
    %s17 = ssub.s32 %s11, 2
    %s18 = sadd.s32 %s11, 1
    %s19 = ssub.s32 %s11, %s18
    %p20 = scmp.eq.s32.totalorder %s19, 0
    %s22 = sadd.s32 %s21, 1
    %s23 = scalar_select %p20, %s21, %s22
    %p26 = pneg %p20
    %p27 = scmp.eq.s32.totalorder %s11, 1
    %p28 = por %p26, %p27
    %p29 = scmp.ne.s32.totalorder %s21, %s24
    %p30 = scmp.eq.s32.totalorder %s11, 0
    %p31 = por %p29, %p30
    %p32 = scmp.ne.s32.totalorder %s21, %s24
    %p33 = scmp.eq.s32.totalorder %s16, 1
    %p34 = por %p32, %p33
    %p35 = scmp.ne.s32.totalorder %s24, %s25
    %p36 = scmp.eq.s32.totalorder %s16, 0
    %p37 = por %p35, %p36
    %p38 = scmp.ne.s32.totalorder %s24, %s25
    %p39 = scmp.eq.s32.totalorder %s17, 1
    %p40 = por %p38, %p39
    %p42 = scmp.ne.s32.totalorder %s25, %s41
    %p43 = scmp.eq.s32.totalorder %s17, 0
    %p44 = por %p42, %p43
    %s46 = sadd.s32 %s45, 1
    %p49 = scmp.eq.s32.totalorder %s11, 1
    %p50 = scmp.ne.s32.totalorder %s45, %s47
    %p51 = scmp.eq.s32.totalorder %s11, 0
    %p52 = por %p50, %p51
    %p53 = scmp.ne.s32.totalorder %s45, %s47
    %p54 = scmp.eq.s32.totalorder %s16, 1
    %p55 = por %p53, %p54
    %p56 = scmp.ne.s32.totalorder %s47, %s48
    %p57 = scmp.eq.s32.totalorder %s16, 0
    %p58 = por %p56, %p57
    %p59 = scmp.ne.s32.totalorder %s47, %s48
    %p60 = scmp.eq.s32.totalorder %s17, 1
    %p61 = por %p59, %p60
    %p63 = scmp.ne.s32.totalorder %s48, %s62
    %p64 = scmp.eq.s32.totalorder %s17, 0
    %p65 = por %p63, %p64
    %s67 = sadd.s32 %s66, 1
    %p70 = scmp.eq.s32.totalorder %s11, 1
    %p71 = scmp.ne.s32.totalorder %s66, %s68
    %p72 = scmp.eq.s32.totalorder %s11, 0
    %p73 = por %p71, %p72
    %p74 = scmp.ne.s32.totalorder %s66, %s68
    %p75 = scmp.eq.s32.totalorder %s16, 1
    %p76 = por %p74, %p75
    %p77 = scmp.ne.s32.totalorder %s68, %s69
    %p78 = scmp.eq.s32.totalorder %s16, 0
    %p79 = por %p77, %p78
    %p80 = scmp.ne.s32.totalorder %s68, %s69
    %p81 = scmp.eq.s32.totalorder %s17, 1
    %p82 = por %p80, %p81
    %p84 = scmp.ne.s32.totalorder %s69, %s83
    %p85 = scmp.eq.s32.totalorder %s17, 0
    %p86 = por %p84, %p85
    %s88 = sadd.s32 %s87, 1
    %p91 = scmp.eq.s32.totalorder %s11, 1
    %p92 = scmp.ne.s32.totalorder %s87, %s89
    %p93 = scmp.eq.s32.totalorder %s11, 0
    %p94 = por %p92, %p93
    %p95 = scmp.ne.s32.totalorder %s87, %s89
    %p96 = scmp.eq.s32.totalorder %s16, 1
    %p97 = por %p95, %p96
    %p98 = scmp.ne.s32.totalorder %s89, %s90
    %p99 = scmp.eq.s32.totalorder %s16, 0
    %p100 = por %p98, %p99
    %p101 = scmp.ne.s32.totalorder %s89, %s90
    %p102 = scmp.eq.s32.totalorder %s17, 1
    %p103 = por %p101, %p102
    %p105 = scmp.ne.s32.totalorder %s90, %s104
    %p106 = scmp.eq.s32.totalorder %s17, 0
    %p107 = por %p105, %p106
    %s109 = sadd.s32 %s108, 1
    %p112 = scmp.eq.s32.totalorder %s11, 1
    %p113 = scmp.ne.s32.totalorder %s108, %s110
    %p114 = scmp.eq.s32.totalorder %s11, 0
    %p115 = por %p113, %p114
    %p116 = scmp.ne.s32.totalorder %s108, %s110
    %p117 = scmp.eq.s32.totalorder %s16, 1
    %p118 = por %p116, %p117
    %p119 = scmp.ne.s32.totalorder %s110, %s111
    %p120 = scmp.eq.s32.totalorder %s16, 0
    %p121 = por %p119, %p120
    %p122 = scmp.ne.s32.totalorder %s110, %s111
    %p123 = scmp.eq.s32.totalorder %s17, 1
    %p124 = por %p122, %p123
    %p126 = scmp.ne.s32.totalorder %s111, %s125
    %p127 = scmp.eq.s32.totalorder %s17, 0
    %p128 = por %p126, %p127
    %s129 = ssub.s32 %s11, %s18
    %p130 = scmp.eq.s32.totalorder %s129, 0
    %s132 = sadd.s32 %s131, 1
    %s133 = scalar_select %p130, %s131, %s132
    %p136 = pneg %p130
    %p137 = scmp.eq.s32.totalorder %s11, 1
    %p138 = por %p136, %p137
    %p139 = scmp.ne.s32.totalorder %s131, %s134
    %p140 = scmp.eq.s32.totalorder %s11, 0
    %p141 = por %p139, %p140
    %p142 = scmp.ne.s32.totalorder %s131, %s134
    %p143 = scmp.eq.s32.totalorder %s16, 1
    %p144 = por %p142, %p143
    %p145 = scmp.ne.s32.totalorder %s134, %s135
    %p146 = scmp.eq.s32.totalorder %s16, 0
    %p147 = por %p145, %p146
    %p148 = scmp.ne.s32.totalorder %s134, %s135
    %p149 = scmp.eq.s32.totalorder %s17, 1
    %p150 = por %p148, %p149
    %p152 = scmp.ne.s32.totalorder %s135, %s151
    %p153 = scmp.eq.s32.totalorder %s17, 0
    %p154 = por %p152, %p153
    %p155 = scmp.le.s32.totalorder 1, %s11
    %p156 = scmp.lt.s32.totalorder %s11, 3
    %p157 = pnand %p155, %p156
    %p158 = pneg %p157
    // Predicated region
    $region9: #{tpu_custom_call.1} parent=5 // pred_check
      _
    $region10: #{tpu_custom_call.1} parent=5 // pred_check_branch
      %160 = sbr.rel (%p157) target = $region12
    $region11: #{tpu_custom_call.1} parent=5 // pred_region
      %s161 = ssub.s32 %s11, 1
      // Predicated region
      $region13: #{tpu_custom_call.1} parent=11 // pred_check
        %p162 = pneg %p58
      $region14: #{tpu_custom_call.1} parent=11 // pred_check_branch
        %164 = sbr.rel (%p162) target = $region16
      $region15: #{tpu_custom_call.1} parent=11 // pred_region
        _
      $region16: #{tpu_custom_call.1} parent=11 // pred_fallthru
        _
      // Predicated region
      $region17: #{tpu_custom_call.1} parent=11 // pred_check
        %p165 = pneg %p79
      $region18: #{tpu_custom_call.1} parent=11 // pred_check_branch
        %167 = sbr.rel (%p165) target = $region20
      $region19: #{tpu_custom_call.1} parent=11 // pred_region
        _
      $region20: #{tpu_custom_call.1} parent=11 // pred_fallthru
        _
      // Predicated region
      $region21: #{tpu_custom_call.1} parent=11 // pred_check
        %p168 = pneg %p100
      $region22: #{tpu_custom_call.1} parent=11 // pred_check_branch
        %170 = sbr.rel (%p168) target = $region24
      $region23: #{tpu_custom_call.1} parent=11 // pred_region
        _
      $region24: #{tpu_custom_call.1} parent=11 // pred_fallthru
        _
      // Predicated region
      $region25: #{tpu_custom_call.1} parent=11 // pred_check
        %p171 = pneg %p121
      $region26: #{tpu_custom_call.1} parent=11 // pred_check_branch
        %173 = sbr.rel (%p171) target = $region28
      $region27: #{tpu_custom_call.1} parent=11 // pred_region
        _
      $region28: #{tpu_custom_call.1} parent=11 // pred_fallthru
        _
    $region12: #{tpu_custom_call.1} parent=5 // pred_fallthru
      _
    %p174 = scmp.lt.s32.totalorder %s11, 2
    // Predicated region
    $region29: #{tpu_custom_call.1} parent=5 // pred_check
      %p175 = pneg %p174
    $region30: #{tpu_custom_call.1} parent=5 // pred_check_branch
      %177 = sbr.rel (%p175) target = $region32
    $region31: #{tpu_custom_call.1} parent=5 // pred_region
      // Predicated region
      $region33: #{tpu_custom_call.1} parent=31 // pred_check
        %p178 = pneg %p31
      $region34: #{tpu_custom_call.1} parent=31 // pred_check_branch
        %180 = sbr.rel (%p178) target = $region36
      $region35: #{tpu_custom_call.1} parent=31 // pred_region
        %p181 = scmp.lt.s32.totalorder %s11, 1
        %s182 = scalar_select %p181, %s11, 1
        %s183 = smul.addr %s182, 32
        %s184 = smul.addr %s183, 8
        %s185 = scalar_lea.vmem %s0, %s184
      $region36: #{tpu_custom_call.1} parent=31 // pred_fallthru
        _
    $region32: #{tpu_custom_call.1} parent=5 // pred_fallthru
      _
    %p186 = scmp.le.s32.totalorder 1, %s11
    %p187 = scmp.lt.s32.totalorder %s11, 3
    %p188 = pnand %p186, %p187
    %p189 = pneg %p188
    // Predicated region
    $region37: #{tpu_custom_call.1} parent=5 // pred_check
      _
    $region38: #{tpu_custom_call.1} parent=5 // pred_check_branch
      %191 = sbr.rel (%p188) target = $region40
    $region39: #{tpu_custom_call.1} parent=5 // pred_region
      %s192 = ssub.s32 %s11, 1
      %p193 = scmp.lt.s32.totalorder %s16, 1
      %s194 = scalar_select %p193, %s16, 1
      %s195 = smul.addr %s194, 32
      %s196 = smul.addr %s195, 8
      %s197 = scalar_lea.vmem %s0, %s196
      %p198 = pneg %p37
      %p199 = pneg %p34
      %p200 = pneg %p58
      %p201 = pneg %p55
      %p202 = pneg %p79
      %p203 = pneg %p76
      %p204 = pneg %p100
      %p205 = pneg %p97
      %p206 = pneg %p121
      %p207 = pneg %p118
      %p208 = pneg %p147
      %p209 = pneg %p144
      %p210 = scmp.lt.s32.totalorder %s16, 1
      %s211 = scalar_select %p210, %s16, 1
      %s212 = smul.addr %s211, 32
      %s213 = smul.addr %s212, 8
      %s214 = scalar_lea.vmem %s5, %s213
      %p215 = scmp.lt.s32.totalorder %s16, 1
      %s216 = scalar_select %p215, %s16, 1
      %s217 = smul.addr %s216, 32
      %s218 = smul.addr %s217, 8
      %s219 = scalar_lea.vmem %s0, %s218
      %p220 = scmp.lt.s32.totalorder %s16, 1
      %s221 = scalar_select %p220, %s16, 1
      %s222 = smul.addr %s221, 32
      %s223 = smul.addr %s222, 8
      %s224 = scalar_lea.vmem %s5, %s223
      %v226 = vld [vmem:[%s1] sm:$0xf]
      %v227 = vld [vmem:[%s1 + $0x4] sm:$0xf]
      %v228 = vld [vmem:[%s1 + $0x8] sm:$0xf]
      %v229 = vld [vmem:[%s1 + $0xc] sm:$0xf]
      %v230 = vld [vmem:[%s1 + $0x10] sm:$0x3]
      %v231 = vld [vmem:[%s3] sm:$0xf]
      %v232 = vld [vmem:[%s3 + $0x4] sm:$0xf]
      %v233 = vld [vmem:[%s3 + $0x8] sm:$0xf]
      %v234 = vld [vmem:[%s3 + $0xc] sm:$0xf]
      %v235 = vld [vmem:[%s3 + $0x10] sm:$0x3]
      %v236 = vld [vmem:[%s2] sm:$0x1]
      %v237 = vld [vmem:[%s4] sm:$0x1]
      %v238 = vld [vmem:[%s219] sm:$0xff]
      %v239 = vld [vmem:[%s219 + $0x8] sm:$0xff]
      %v240 = vld [vmem:[%s219 + $0x10] sm:$0xff]
      %v241 = vld [vmem:[%s219 + $0x18] sm:$0xff]
      %v242 = vld [vmem:[%s219 + $0x20] sm:$0xff]
      %v243 = vld [vmem:[%s219 + $0x28] sm:$0xff]
      %v244 = vld [vmem:[%s219 + $0x30] sm:$0xff]
      %v245 = vld [vmem:[%s219 + $0x38] sm:$0xff]
      %v246 = vld [vmem:[%s219 + $0x40] sm:$0xff]
      %v247 = vld [vmem:[%s219 + $0x48] sm:$0xff]
      %v248 = vld [vmem:[%s219 + $0x50] sm:$0xff]
      %v249 = vld [vmem:[%s219 + $0x58] sm:$0xff]
      %v250 = vld [vmem:[%s219 + $0x60] sm:$0xff]
      %v251 = vld [vmem:[%s219 + $0x68] sm:$0xff]
      %v252 = vld [vmem:[%s219 + $0x70] sm:$0xff]
      %v253 = vld [vmem:[%s219 + $0x78] sm:$0xff]
      %v254 = vld [vmem:[%s219 + $0x80] sm:$0xff]
      %v255 = vld [vmem:[%s219 + $0x88] sm:$0xff]
      %v256 = vld [vmem:[%s219 + $0x90] sm:$0xff]
      %v257 = vld [vmem:[%s219 + $0x98] sm:$0xff]
      %v258 = vld [vmem:[%s219 + $0xa0] sm:$0xff]
      %v259 = vld [vmem:[%s219 + $0xa8] sm:$0xff]
      %v260 = vld [vmem:[%s219 + $0xb0] sm:$0xff]
      %v261 = vld [vmem:[%s219 + $0xb8] sm:$0xff]
      %v262 = vld [vmem:[%s219 + $0xc0] sm:$0xff]
      %v263 = vld [vmem:[%s219 + $0xc8] sm:$0xff]
      %v264 = vld [vmem:[%s219 + $0xd0] sm:$0xff]
      %v265 = vld [vmem:[%s219 + $0xd8] sm:$0xff]
      %v266 = vld [vmem:[%s219 + $0xe0] sm:$0xff]
      %v267 = vld [vmem:[%s219 + $0xe8] sm:$0xff]
      %v268 = vld [vmem:[%s219 + $0xf0] sm:$0xff]
      %v269 = vld [vmem:[%s219 + $0xf8] sm:$0xff]
      %v270 = vpack.c.bf16 %v239, %v238
      %v271 = vpack.c.bf16 %v241, %v240
      %v272 = vpack.c.bf16 %v243, %v242
      %v273 = vpack.c.bf16 %v245, %v244
      %v274 = vpack.c.bf16 %v247, %v246
      %v275 = vpack.c.bf16 %v249, %v248
      %v276 = vpack.c.bf16 %v251, %v250
      %v277 = vpack.c.bf16 %v253, %v252
      %v278 = vpack.c.bf16 %v255, %v254
      %v279 = vpack.c.bf16 %v257, %v256
      %v280 = vpack.c.bf16 %v259, %v258
      %v281 = vpack.c.bf16 %v261, %v260
      %v282 = vpack.c.bf16 %v263, %v262
      %v283 = vpack.c.bf16 %v265, %v264
      %v284 = vpack.c.bf16 %v267, %v266
      %v285 = vpack.c.bf16 %v269, %v268
      %v287 = vshrl.u32 0, 16
      %v289 = vrot.slane %v287, 7
      %v290 = vshll.u32 0, 16
      %v292 = vor.u32 %v289, %v290
      %v294 = vshrl.u32 %v270, 16
      %v296 = vrot.slane %v294, 7
      %v297 = vshll.u32 %v270, 16
      %v299 = vor.u32 %v296, %v297
      %v301 = vshrl.u32 %v271, 16
      %v303 = vrot.slane %v301, 7
      %v304 = vshll.u32 %v271, 16
      %v306 = vor.u32 %v303, %v304
      %v308 = vshrl.u32 %v272, 16
      %v310 = vrot.slane %v308, 7
      %v311 = vshll.u32 %v272, 16
      %v313 = vor.u32 %v310, %v311
      %v315 = vshrl.u32 %v273, 16
      %v317 = vrot.slane %v315, 7
      %v318 = vshll.u32 %v273, 16
      %v320 = vor.u32 %v317, %v318
      %v322 = vshrl.u32 %v274, 16
      %v324 = vrot.slane %v322, 7
      %v325 = vshll.u32 %v274, 16
      %v327 = vor.u32 %v324, %v325
      %v329 = vshrl.u32 %v275, 16
      %v331 = vrot.slane %v329, 7
      %v332 = vshll.u32 %v275, 16
      %v334 = vor.u32 %v331, %v332
      %v336 = vshrl.u32 %v276, 16
      %v338 = vrot.slane %v336, 7
      %v339 = vshll.u32 %v276, 16
      %v341 = vor.u32 %v338, %v339
      %v343 = vshrl.u32 %v277, 16
      %v345 = vrot.slane %v343, 7
      %v346 = vshll.u32 %v277, 16
      %v348 = vor.u32 %v345, %v346
      %v350 = vshrl.u32 %v278, 16
      %v352 = vrot.slane %v350, 7
      %v353 = vshll.u32 %v278, 16
      %v355 = vor.u32 %v352, %v353
      %v357 = vshrl.u32 %v279, 16
      %v359 = vrot.slane %v357, 7
      %v360 = vshll.u32 %v279, 16
      %v362 = vor.u32 %v359, %v360
      %v364 = vshrl.u32 %v280, 16
      %v366 = vrot.slane %v364, 7
      %v367 = vshll.u32 %v280, 16
      %v369 = vor.u32 %v366, %v367
      %v371 = vshrl.u32 %v281, 16
      %v373 = vrot.slane %v371, 7
      %v374 = vshll.u32 %v281, 16
      %v376 = vor.u32 %v373, %v374
      %v378 = vshrl.u32 %v282, 16
      %v380 = vrot.slane %v378, 7
      %v381 = vshll.u32 %v282, 16
      %v383 = vor.u32 %v380, %v381
      %v385 = vshrl.u32 %v283, 16
      %v387 = vrot.slane %v385, 7
      %v388 = vshll.u32 %v283, 16
      %v390 = vor.u32 %v387, %v388
      %v392 = vshrl.u32 %v284, 16
      %v394 = vrot.slane %v392, 7
      %v395 = vshll.u32 %v284, 16
      %v397 = vor.u32 %v394, %v395
      %v399 = vshrl.u32 %v285, 16
      %v401 = vrot.slane %v399, 7
      %v402 = vshll.u32 %v285, 16
      %v404 = vor.u32 %v401, %v402
      %vm439 = vcmask 1040384
      %vm440 = vsmask.f32 256
      %vm441 = vmand %vm439, %vm440
      %v442 = vsel %vm441, 0, %v292
      %v443 = vsel %vm441, 0, %v299
      %v444 = vsel %vm441, 0, %v306
      %v445 = vsel %vm441, 0, %v313
      %v446 = vsel %vm441, 0, %v320
      %v447 = vsel %vm441, 0, %v327
      %v448 = vsel %vm441, 0, %v334
      %v449 = vsel %vm441, 0, %v341
      %v450 = vsel %vm441, 0, %v348
      %v451 = vsel %vm441, 0, %v355
      %v452 = vsel %vm441, 0, %v362
      %v453 = vsel %vm441, 0, %v369
      %v454 = vsel %vm441, 0, %v376
      %v455 = vsel %vm441, 0, %v383
      %v456 = vsel %vm441, 0, %v390
      %v457 = vsel %vm441, 0, %v397
      %v458 = vsel %vm441, 0, %v404
      %v459 = vsel %vm441, %v289, 0
      %v460 = vsel %vm441, %v296, 0
      %v461 = vsel %vm441, %v303, 0
      %v462 = vsel %vm441, %v310, 0
      %v463 = vsel %vm441, %v317, 0
      %v464 = vsel %vm441, %v324, 0
      %v465 = vsel %vm441, %v331, 0
      %v466 = vsel %vm441, %v338, 0
      %v467 = vsel %vm441, %v345, 0
      %v468 = vsel %vm441, %v352, 0
      %v469 = vsel %vm441, %v359, 0
      %v470 = vsel %vm441, %v366, 0
      %v471 = vsel %vm441, %v373, 0
      %v472 = vsel %vm441, %v380, 0
      %v473 = vsel %vm441, %v387, 0
      %v474 = vsel %vm441, %v394, 0
      %v475 = vsel %vm441, %v401, 0
      %vm476 = vsmask.f32 7424
      %v478 = vshrl.u32 %v442, 16
      %v480 = vshll.u32 %v442, 16
      %v482 = vrot.slane %v480, 1
      %v483 = vor.u32 %v478, %v482
      %v485 = vshll.u32 %v459, 16
      %v487 = vrot.slane %v485, 1
      %v488 = vsel %vm476, %v483, %v487
      %v490 = vshrl.u32 %v443, 16
      %v492 = vshll.u32 %v443, 16
      %v494 = vrot.slane %v492, 1
      %v495 = vor.u32 %v490, %v494
      %v497 = vshll.u32 %v460, 16
      %v499 = vrot.slane %v497, 1
      %v500 = vsel %vm476, %v495, %v499
      %v502 = vshrl.u32 %v444, 16
      %v504 = vshll.u32 %v444, 16
      %v506 = vrot.slane %v504, 1
      %v507 = vor.u32 %v502, %v506
      %v509 = vshll.u32 %v461, 16
      %v511 = vrot.slane %v509, 1
      %v512 = vsel %vm476, %v507, %v511
      %v514 = vshrl.u32 %v445, 16
      %v516 = vshll.u32 %v445, 16
      %v518 = vrot.slane %v516, 1
      %v519 = vor.u32 %v514, %v518
      %v521 = vshll.u32 %v462, 16
      %v523 = vrot.slane %v521, 1
      %v524 = vsel %vm476, %v519, %v523
      %v526 = vshrl.u32 %v446, 16
      %v528 = vshll.u32 %v446, 16
      %v530 = vrot.slane %v528, 1
      %v531 = vor.u32 %v526, %v530
      %v533 = vshll.u32 %v463, 16
      %v535 = vrot.slane %v533, 1
      %v536 = vsel %vm476, %v531, %v535
      %v538 = vshrl.u32 %v447, 16
      %v540 = vshll.u32 %v447, 16
      %v542 = vrot.slane %v540, 1
      %v543 = vor.u32 %v538, %v542
      %v545 = vshll.u32 %v464, 16
      %v547 = vrot.slane %v545, 1
      %v548 = vsel %vm476, %v543, %v547
      %v550 = vshrl.u32 %v448, 16
      %v552 = vshll.u32 %v448, 16
      %v554 = vrot.slane %v552, 1
      %v555 = vor.u32 %v550, %v554
      %v557 = vshll.u32 %v465, 16
      %v559 = vrot.slane %v557, 1
      %v560 = vsel %vm476, %v555, %v559
      %v562 = vshrl.u32 %v449, 16
      %v564 = vshll.u32 %v449, 16
      %v566 = vrot.slane %v564, 1
      %v567 = vor.u32 %v562, %v566
      %v569 = vshll.u32 %v466, 16
      %v571 = vrot.slane %v569, 1
      %v572 = vsel %vm476, %v567, %v571
      %v574 = vshrl.u32 %v450, 16
      %v576 = vshll.u32 %v450, 16
      %v578 = vrot.slane %v576, 1
      %v579 = vor.u32 %v574, %v578
      %v581 = vshll.u32 %v467, 16
      %v583 = vrot.slane %v581, 1
      %v584 = vsel %vm476, %v579, %v583
      %v586 = vshrl.u32 %v451, 16
      %v588 = vshll.u32 %v451, 16
      %v590 = vrot.slane %v588, 1
      %v591 = vor.u32 %v586, %v590
      %v593 = vshll.u32 %v468, 16
      %v595 = vrot.slane %v593, 1
      %v596 = vsel %vm476, %v591, %v595
      %v598 = vshrl.u32 %v452, 16
      %v600 = vshll.u32 %v452, 16
      %v602 = vrot.slane %v600, 1
      %v603 = vor.u32 %v598, %v602
      %v605 = vshll.u32 %v469, 16
      %v607 = vrot.slane %v605, 1
      %v608 = vsel %vm476, %v603, %v607
      %v610 = vshrl.u32 %v453, 16
      %v612 = vshll.u32 %v453, 16
      %v614 = vrot.slane %v612, 1
      %v615 = vor.u32 %v610, %v614
      %v617 = vshll.u32 %v470, 16
      %v619 = vrot.slane %v617, 1
      %v620 = vsel %vm476, %v615, %v619
      %v622 = vshrl.u32 %v454, 16
      %v624 = vshll.u32 %v454, 16
      %v626 = vrot.slane %v624, 1
      %v627 = vor.u32 %v622, %v626
      %v629 = vshll.u32 %v471, 16
      %v631 = vrot.slane %v629, 1
      %v632 = vsel %vm476, %v627, %v631
      %v634 = vshrl.u32 %v455, 16
      %v636 = vshll.u32 %v455, 16
      %v638 = vrot.slane %v636, 1
      %v639 = vor.u32 %v634, %v638
      %v641 = vshll.u32 %v472, 16
      %v643 = vrot.slane %v641, 1
      %v644 = vsel %vm476, %v639, %v643
      %v646 = vshrl.u32 %v456, 16
      %v648 = vshll.u32 %v456, 16
      %v650 = vrot.slane %v648, 1
      %v651 = vor.u32 %v646, %v650
      %v653 = vshll.u32 %v473, 16
      %v655 = vrot.slane %v653, 1
      %v656 = vsel %vm476, %v651, %v655
      %v658 = vshrl.u32 %v457, 16
      %v660 = vshll.u32 %v457, 16
      %v662 = vrot.slane %v660, 1
      %v663 = vor.u32 %v658, %v662
      %v665 = vshll.u32 %v474, 16
      %v667 = vrot.slane %v665, 1
      %v668 = vsel %vm476, %v663, %v667
      %vm701 = vcmask 1046528
      %v702 = vrot.slane %v442, 1
      %v703 = vrot.slane %v459, 1
      %v704 = vsel %vm701, %v702, %v703
      %v705 = vrot.slane %v443, 1
      %v706 = vrot.slane %v460, 1
      %v707 = vsel %vm701, %v705, %v706
      %v708 = vrot.slane %v444, 1
      %v709 = vrot.slane %v461, 1
      %v710 = vsel %vm701, %v708, %v709
      %v711 = vrot.slane %v445, 1
      %v712 = vrot.slane %v462, 1
      %v713 = vsel %vm701, %v711, %v712
      %v714 = vrot.slane %v446, 1
      %v715 = vrot.slane %v463, 1
      %v716 = vsel %vm701, %v714, %v715
      %v717 = vrot.slane %v447, 1
      %v718 = vrot.slane %v464, 1
      %v719 = vsel %vm701, %v717, %v718
      %v720 = vrot.slane %v448, 1
      %v721 = vrot.slane %v465, 1
      %v722 = vsel %vm701, %v720, %v721
      %v723 = vrot.slane %v449, 1
      %v724 = vrot.slane %v466, 1
      %v725 = vsel %vm701, %v723, %v724
      %v726 = vrot.slane %v450, 1
      %v727 = vrot.slane %v467, 1
      %v728 = vsel %vm701, %v726, %v727
      %v729 = vrot.slane %v451, 1
      %v730 = vrot.slane %v468, 1
      %v731 = vsel %vm701, %v729, %v730
      %v732 = vrot.slane %v452, 1
      %v733 = vrot.slane %v469, 1
      %v734 = vsel %vm701, %v732, %v733
      %v735 = vrot.slane %v453, 1
      %v736 = vrot.slane %v470, 1
      %v737 = vsel %vm701, %v735, %v736
      %v738 = vrot.slane %v454, 1
      %v739 = vrot.slane %v471, 1
      %v740 = vsel %vm701, %v738, %v739
      %v741 = vrot.slane %v455, 1
      %v742 = vrot.slane %v472, 1
      %v743 = vsel %vm701, %v741, %v742
      %v744 = vrot.slane %v456, 1
      %v745 = vrot.slane %v473, 1
      %v746 = vsel %vm701, %v744, %v745
      %v747 = vrot.slane %v457, 1
      %v748 = vrot.slane %v474, 1
      %v749 = vsel %vm701, %v747, %v748
      %v751 = vshrl.u32 %v458, 16
      %v753 = vshll.u32 %v458, 16
      %v755 = vrot.slane %v753, 1
      %v756 = vor.u32 %v751, %v755
      %v758 = vshll.u32 %v475, 16
      %v760 = vrot.slane %v758, 1
      %v761 = vsel %vm476, %v756, %v760
      %v764 = vrot.slane %v458, 1
      %v765 = vrot.slane %v475, 1
      %v766 = vsel %vm701, %v764, %v765
      %767 = vrot.lane.b32.xlu0 %v488, 4
      %v768 = vpop.permute.xlu0 %767
      %769 = vrot.lane.b32.xlu0 %v500, 4
      %v770 = vpop.permute.xlu0 %769
      %771 = vrot.lane.b32.xlu0 %v512, 4
      %v772 = vpop.permute.xlu0 %771
      %773 = vrot.lane.b32.xlu0 %v524, 4
      %v774 = vpop.permute.xlu0 %773
      %775 = vrot.lane.b32.xlu0 %v536, 4
      %v776 = vpop.permute.xlu0 %775
      %777 = vrot.lane.b32.xlu0 %v548, 4
      %v778 = vpop.permute.xlu0 %777
      %779 = vrot.lane.b32.xlu0 %v560, 4
      %v780 = vpop.permute.xlu0 %779
      %781 = vrot.lane.b32.xlu0 %v572, 4
      %v782 = vpop.permute.xlu0 %781
      %783 = vrot.lane.b32.xlu0 %v584, 4
      %v784 = vpop.permute.xlu0 %783
      %785 = vrot.lane.b32.xlu0 %v596, 4
      %v786 = vpop.permute.xlu0 %785
      %787 = vrot.lane.b32.xlu0 %v608, 4
      %v788 = vpop.permute.xlu0 %787
      %789 = vrot.lane.b32.xlu0 %v620, 4
      %v790 = vpop.permute.xlu0 %789
      %791 = vrot.lane.b32.xlu0 %v632, 4
      %v792 = vpop.permute.xlu0 %791
      %793 = vrot.lane.b32.xlu0 %v644, 4
      %v794 = vpop.permute.xlu0 %793
      %795 = vrot.lane.b32.xlu0 %v656, 4
      %v796 = vpop.permute.xlu0 %795
      %797 = vrot.lane.b32.xlu0 %v668, 4
      %v798 = vpop.permute.xlu0 %797
      %799 = vrot.lane.b32.xlu0 %v704, 8
      %v800 = vpop.permute.xlu0 %799
      %801 = vrot.lane.b32.xlu0 %v707, 8
      %v802 = vpop.permute.xlu0 %801
      %803 = vrot.lane.b32.xlu0 %v710, 8
      %v804 = vpop.permute.xlu0 %803
      %805 = vrot.lane.b32.xlu0 %v713, 8
      %v806 = vpop.permute.xlu0 %805
      %807 = vrot.lane.b32.xlu0 %v716, 8
      %v808 = vpop.permute.xlu0 %807
      %809 = vrot.lane.b32.xlu0 %v719, 8
      %v810 = vpop.permute.xlu0 %809
      %811 = vrot.lane.b32.xlu0 %v722, 8
      %v812 = vpop.permute.xlu0 %811
      %813 = vrot.lane.b32.xlu0 %v725, 8
      %v814 = vpop.permute.xlu0 %813
      %815 = vrot.lane.b32.xlu0 %v728, 8
      %v816 = vpop.permute.xlu0 %815
      %817 = vrot.lane.b32.xlu0 %v731, 8
      %v818 = vpop.permute.xlu0 %817
      %819 = vrot.lane.b32.xlu0 %v734, 8
      %v820 = vpop.permute.xlu0 %819
      %821 = vrot.lane.b32.xlu0 %v737, 8
      %v822 = vpop.permute.xlu0 %821
      %823 = vrot.lane.b32.xlu0 %v740, 8
      %v824 = vpop.permute.xlu0 %823
      %825 = vrot.lane.b32.xlu0 %v743, 8
      %v826 = vpop.permute.xlu0 %825
      %827 = vrot.lane.b32.xlu0 %v746, 8
      %v828 = vpop.permute.xlu0 %827
      %829 = vrot.lane.b32.xlu0 %v749, 8
      %v830 = vpop.permute.xlu0 %829
      %831 = vrot.lane.b32.xlu0 %v443, 12
      %v832 = vpop.permute.xlu0 %831
      %833 = vrot.lane.b32.xlu0 %v444, 12
      %v834 = vpop.permute.xlu0 %833
      %835 = vrot.lane.b32.xlu0 %v445, 12
      %v836 = vpop.permute.xlu0 %835
      %837 = vrot.lane.b32.xlu0 %v446, 12
      %v838 = vpop.permute.xlu0 %837
      %839 = vrot.lane.b32.xlu0 %v447, 12
      %v840 = vpop.permute.xlu0 %839
      %841 = vrot.lane.b32.xlu0 %v448, 12
      %v842 = vpop.permute.xlu0 %841
      %843 = vrot.lane.b32.xlu0 %v449, 12
      %v844 = vpop.permute.xlu0 %843
      %845 = vrot.lane.b32.xlu0 %v450, 12
      %v846 = vpop.permute.xlu0 %845
      %847 = vrot.lane.b32.xlu0 %v451, 12
      %v848 = vpop.permute.xlu0 %847
      %849 = vrot.lane.b32.xlu0 %v452, 12
      %v850 = vpop.permute.xlu0 %849
      %851 = vrot.lane.b32.xlu0 %v453, 12
      %v852 = vpop.permute.xlu0 %851
      %853 = vrot.lane.b32.xlu0 %v454, 12
      %v854 = vpop.permute.xlu0 %853
      %855 = vrot.lane.b32.xlu0 %v455, 12
      %v856 = vpop.permute.xlu0 %855
      %857 = vrot.lane.b32.xlu0 %v456, 12
      %v858 = vpop.permute.xlu0 %857
      %859 = vrot.lane.b32.xlu0 %v457, 12
      %v860 = vpop.permute.xlu0 %859
      %861 = vrot.lane.b32.xlu0 %v458, 12
      %v862 = vpop.permute.xlu0 %861
      %863 = vrot.lane.b32.xlu0 %v500, 16
      %v864 = vpop.permute.xlu0 %863
      %865 = vrot.lane.b32.xlu0 %v512, 16
      %v866 = vpop.permute.xlu0 %865
      %867 = vrot.lane.b32.xlu0 %v524, 16
      %v868 = vpop.permute.xlu0 %867
      %869 = vrot.lane.b32.xlu0 %v536, 16
      %v870 = vpop.permute.xlu0 %869
      %871 = vrot.lane.b32.xlu0 %v548, 16
      %v872 = vpop.permute.xlu0 %871
      %873 = vrot.lane.b32.xlu0 %v560, 16
      %v874 = vpop.permute.xlu0 %873
      %875 = vrot.lane.b32.xlu0 %v572, 16
      %v876 = vpop.permute.xlu0 %875
      %877 = vrot.lane.b32.xlu0 %v584, 16
      %v878 = vpop.permute.xlu0 %877
      %879 = vrot.lane.b32.xlu0 %v596, 16
      %v880 = vpop.permute.xlu0 %879
      %881 = vrot.lane.b32.xlu0 %v608, 16
      %v882 = vpop.permute.xlu0 %881
      %883 = vrot.lane.b32.xlu0 %v620, 16
      %v884 = vpop.permute.xlu0 %883
      %885 = vrot.lane.b32.xlu0 %v632, 16
      %v886 = vpop.permute.xlu0 %885
      %887 = vrot.lane.b32.xlu0 %v644, 16
      %v888 = vpop.permute.xlu0 %887
      %889 = vrot.lane.b32.xlu0 %v656, 16
      %v890 = vpop.permute.xlu0 %889
      %891 = vrot.lane.b32.xlu0 %v668, 16
      %v892 = vpop.permute.xlu0 %891
      %893 = vrot.lane.b32.xlu0 %v761, 16
      %v894 = vpop.permute.xlu0 %893
      %895 = vrot.lane.b32.xlu0 %v707, 20
      %v896 = vpop.permute.xlu0 %895
      %897 = vrot.lane.b32.xlu0 %v710, 20
      %v898 = vpop.permute.xlu0 %897
      %899 = vrot.lane.b32.xlu0 %v713, 20
      %v900 = vpop.permute.xlu0 %899
      %901 = vrot.lane.b32.xlu0 %v716, 20
      %v902 = vpop.permute.xlu0 %901
      %903 = vrot.lane.b32.xlu0 %v719, 20
      %v904 = vpop.permute.xlu0 %903
      %905 = vrot.lane.b32.xlu0 %v722, 20
      %v906 = vpop.permute.xlu0 %905
      %907 = vrot.lane.b32.xlu0 %v725, 20
      %v908 = vpop.permute.xlu0 %907
      %909 = vrot.lane.b32.xlu0 %v728, 20
      %v910 = vpop.permute.xlu0 %909
      %911 = vrot.lane.b32.xlu0 %v731, 20
      %v912 = vpop.permute.xlu0 %911
      %913 = vrot.lane.b32.xlu0 %v734, 20
      %v914 = vpop.permute.xlu0 %913
      %915 = vrot.lane.b32.xlu0 %v737, 20
      %v916 = vpop.permute.xlu0 %915
      %917 = vrot.lane.b32.xlu0 %v740, 20
      %v918 = vpop.permute.xlu0 %917
      %919 = vrot.lane.b32.xlu0 %v743, 20
      %v920 = vpop.permute.xlu0 %919
      %921 = vrot.lane.b32.xlu0 %v746, 20
      %v922 = vpop.permute.xlu0 %921
      %923 = vrot.lane.b32.xlu0 %v749, 20
      %v924 = vpop.permute.xlu0 %923
      %925 = vrot.lane.b32.xlu0 %v766, 20
      %v926 = vpop.permute.xlu0 %925
      %927 = vrot.lane.b32.xlu0 %v444, 24
      %v928 = vpop.permute.xlu0 %927
      %929 = vrot.lane.b32.xlu0 %v445, 24
      %v930 = vpop.permute.xlu0 %929
      %931 = vrot.lane.b32.xlu0 %v446, 24
      %v932 = vpop.permute.xlu0 %931
      %933 = vrot.lane.b32.xlu0 %v447, 24
      %v934 = vpop.permute.xlu0 %933
      %935 = vrot.lane.b32.xlu0 %v448, 24
      %v936 = vpop.permute.xlu0 %935
      %937 = vrot.lane.b32.xlu0 %v449, 24
      %v938 = vpop.permute.xlu0 %937
      %939 = vrot.lane.b32.xlu0 %v450, 24
      %v940 = vpop.permute.xlu0 %939
      %941 = vrot.lane.b32.xlu0 %v451, 24
      %v942 = vpop.permute.xlu0 %941
      %943 = vrot.lane.b32.xlu0 %v452, 24
      %v944 = vpop.permute.xlu0 %943
      %945 = vrot.lane.b32.xlu0 %v453, 24
      %v946 = vpop.permute.xlu0 %945
      %947 = vrot.lane.b32.xlu0 %v454, 24
      %v948 = vpop.permute.xlu0 %947
      %949 = vrot.lane.b32.xlu0 %v455, 24
      %v950 = vpop.permute.xlu0 %949
      %951 = vrot.lane.b32.xlu0 %v456, 24
      %v952 = vpop.permute.xlu0 %951
      %953 = vrot.lane.b32.xlu0 %v457, 24
      %v954 = vpop.permute.xlu0 %953
      %955 = vrot.lane.b32.xlu0 %v458, 24
      %v956 = vpop.permute.xlu0 %955
      %957 = vrot.lane.b32.xlu0 %v442, 24
      %v958 = vpop.permute.xlu0 %957
      %959 = vrot.lane.b32.xlu0 %v512, 28
      %v960 = vpop.permute.xlu0 %959
      %961 = vrot.lane.b32.xlu0 %v524, 28
      %v962 = vpop.permute.xlu0 %961
      %963 = vrot.lane.b32.xlu0 %v536, 28
      %v964 = vpop.permute.xlu0 %963
      %965 = vrot.lane.b32.xlu0 %v548, 28
      %v966 = vpop.permute.xlu0 %965
      %967 = vrot.lane.b32.xlu0 %v560, 28
      %v968 = vpop.permute.xlu0 %967
      %969 = vrot.lane.b32.xlu0 %v572, 28
      %v970 = vpop.permute.xlu0 %969
      %971 = vrot.lane.b32.xlu0 %v584, 28
      %v972 = vpop.permute.xlu0 %971
      %973 = vrot.lane.b32.xlu0 %v596, 28
      %v974 = vpop.permute.xlu0 %973
      %975 = vrot.lane.b32.xlu0 %v608, 28
      %v976 = vpop.permute.xlu0 %975
      %977 = vrot.lane.b32.xlu0 %v620, 28
      %v978 = vpop.permute.xlu0 %977
      %979 = vrot.lane.b32.xlu0 %v632, 28
      %v980 = vpop.permute.xlu0 %979
      %981 = vrot.lane.b32.xlu0 %v644, 28
      %v982 = vpop.permute.xlu0 %981
      %983 = vrot.lane.b32.xlu0 %v656, 28
      %v984 = vpop.permute.xlu0 %983
      %985 = vrot.lane.b32.xlu0 %v668, 28
      %v986 = vpop.permute.xlu0 %985
      %987 = vrot.lane.b32.xlu0 %v761, 28
      %v988 = vpop.permute.xlu0 %987
      %989 = vrot.lane.b32.xlu0 %v488, 28
      %v990 = vpop.permute.xlu0 %989
      %991 = vrot.lane.b32.xlu0 %v710, 32
      %v992 = vpop.permute.xlu0 %991
      %993 = vrot.lane.b32.xlu0 %v713, 32
      %v994 = vpop.permute.xlu0 %993
      %995 = vrot.lane.b32.xlu0 %v716, 32
      %v996 = vpop.permute.xlu0 %995
      %997 = vrot.lane.b32.xlu0 %v719, 32
      %v998 = vpop.permute.xlu0 %997
      %999 = vrot.lane.b32.xlu0 %v722, 32
      %v1000 = vpop.permute.xlu0 %999
      %1001 = vrot.lane.b32.xlu0 %v725, 32
      %v1002 = vpop.permute.xlu0 %1001
      %1003 = vrot.lane.b32.xlu0 %v728, 32
      %v1004 = vpop.permute.xlu0 %1003
      %1005 = vrot.lane.b32.xlu0 %v731, 32
      %v1006 = vpop.permute.xlu0 %1005
      %1007 = vrot.lane.b32.xlu0 %v734, 32
      %v1008 = vpop.permute.xlu0 %1007
      %1009 = vrot.lane.b32.xlu0 %v737, 32
      %v1010 = vpop.permute.xlu0 %1009
      %1011 = vrot.lane.b32.xlu0 %v740, 32
      %v1012 = vpop.permute.xlu0 %1011
      %1013 = vrot.lane.b32.xlu0 %v743, 32
      %v1014 = vpop.permute.xlu0 %1013
      %1015 = vrot.lane.b32.xlu0 %v746, 32
      %v1016 = vpop.permute.xlu0 %1015
      %1017 = vrot.lane.b32.xlu0 %v749, 32
      %v1018 = vpop.permute.xlu0 %1017
      %1019 = vrot.lane.b32.xlu0 %v766, 32
      %v1020 = vpop.permute.xlu0 %1019
      %1021 = vrot.lane.b32.xlu0 %v704, 32
      %v1022 = vpop.permute.xlu0 %1021
      %vm1023 = vcmask 31744
      %v1025 = vsel %vm1023, %v442, %v768
      %v1027 = vsel %vm1023, %v443, %v770
      %v1029 = vsel %vm1023, %v444, %v772
      %v1031 = vsel %vm1023, %v445, %v774
      %v1033 = vsel %vm1023, %v446, %v776
      %v1035 = vsel %vm1023, %v447, %v778
      %v1037 = vsel %vm1023, %v448, %v780
      %v1039 = vsel %vm1023, %v449, %v782
      %v1041 = vsel %vm1023, %v450, %v784
      %v1043 = vsel %vm1023, %v451, %v786
      %v1045 = vsel %vm1023, %v452, %v788
      %v1047 = vsel %vm1023, %v453, %v790
      %v1049 = vsel %vm1023, %v454, %v792
      %v1051 = vsel %vm1023, %v455, %v794
      %v1053 = vsel %vm1023, %v456, %v796
      %v1055 = vsel %vm1023, %v457, %v798
      %vm1056 = vcmask 64512
      %v1058 = vsel %vm1056, %v1025, %v800
      %v1060 = vsel %vm1056, %v1027, %v802
      %v1062 = vsel %vm1056, %v1029, %v804
      %v1064 = vsel %vm1056, %v1031, %v806
      %v1066 = vsel %vm1056, %v1033, %v808
      %v1068 = vsel %vm1056, %v1035, %v810
      %v1070 = vsel %vm1056, %v1037, %v812
      %v1072 = vsel %vm1056, %v1039, %v814
      %v1074 = vsel %vm1056, %v1041, %v816
      %v1076 = vsel %vm1056, %v1043, %v818
      %v1078 = vsel %vm1056, %v1045, %v820
      %v1080 = vsel %vm1056, %v1047, %v822
      %v1082 = vsel %vm1056, %v1049, %v824
      %v1084 = vsel %vm1056, %v1051, %v826
      %v1086 = vsel %vm1056, %v1053, %v828
      %v1088 = vsel %vm1056, %v1055, %v830
      %vm1089 = vcmask 97280
      %v1091 = vsel %vm1089, %v1058, %v832
      %v1093 = vsel %vm1089, %v1060, %v834
      %v1095 = vsel %vm1089, %v1062, %v836
      %v1097 = vsel %vm1089, %v1064, %v838
      %v1099 = vsel %vm1089, %v1066, %v840
      %v1101 = vsel %vm1089, %v1068, %v842
      %v1103 = vsel %vm1089, %v1070, %v844
      %v1105 = vsel %vm1089, %v1072, %v846
      %v1107 = vsel %vm1089, %v1074, %v848
      %v1109 = vsel %vm1089, %v1076, %v850
      %v1111 = vsel %vm1089, %v1078, %v852
      %v1113 = vsel %vm1089, %v1080, %v854
      %v1115 = vsel %vm1089, %v1082, %v856
      %v1117 = vsel %vm1089, %v1084, %v858
      %v1119 = vsel %vm1089, %v1086, %v860
      %v1121 = vsel %vm1089, %v1088, %v862
      %vm1122 = vcmask 130048
      %v1124 = vsel %vm1122, %v1091, %v864
      %v1126 = vsel %vm1122, %v1093, %v866
      %v1128 = vsel %vm1122, %v1095, %v868
      %v1130 = vsel %vm1122, %v1097, %v870
      %v1132 = vsel %vm1122, %v1099, %v872
      %v1134 = vsel %vm1122, %v1101, %v874
      %v1136 = vsel %vm1122, %v1103, %v876
      %v1138 = vsel %vm1122, %v1105, %v878
      %v1140 = vsel %vm1122, %v1107, %v880
      %v1142 = vsel %vm1122, %v1109, %v882
      %v1144 = vsel %vm1122, %v1111, %v884
      %v1146 = vsel %vm1122, %v1113, %v886
      %v1148 = vsel %vm1122, %v1115, %v888
      %v1150 = vsel %vm1122, %v1117, %v890
      %v1152 = vsel %vm1122, %v1119, %v892
      %v1154 = vsel %vm1122, %v1121, %v894
      %vm1155 = vcmask 162816
      %v1157 = vsel %vm1155, %v1124, %v896
      %v1159 = vsel %vm1155, %v1126, %v898
      %v1161 = vsel %vm1155, %v1128, %v900
      %v1163 = vsel %vm1155, %v1130, %v902
      %v1165 = vsel %vm1155, %v1132, %v904
      %v1167 = vsel %vm1155, %v1134, %v906
      %v1169 = vsel %vm1155, %v1136, %v908
      %v1171 = vsel %vm1155, %v1138, %v910
      %v1173 = vsel %vm1155, %v1140, %v912
      %v1175 = vsel %vm1155, %v1142, %v914
      %v1177 = vsel %vm1155, %v1144, %v916
      %v1179 = vsel %vm1155, %v1146, %v918
      %v1181 = vsel %vm1155, %v1148, %v920
      %v1183 = vsel %vm1155, %v1150, %v922
      %v1185 = vsel %vm1155, %v1152, %v924
      %v1187 = vsel %vm1155, %v1154, %v926
      %vm1188 = vcmask 195584
      %v1190 = vsel %vm1188, %v1157, %v928
      %v1192 = vsel %vm1188, %v1159, %v930
      %v1194 = vsel %vm1188, %v1161, %v932
      %v1196 = vsel %vm1188, %v1163, %v934
      %v1198 = vsel %vm1188, %v1165, %v936
      %v1200 = vsel %vm1188, %v1167, %v938
      %v1202 = vsel %vm1188, %v1169, %v940
      %v1204 = vsel %vm1188, %v1171, %v942
      %v1206 = vsel %vm1188, %v1173, %v944
      %v1208 = vsel %vm1188, %v1175, %v946
      %v1210 = vsel %vm1188, %v1177, %v948
      %v1212 = vsel %vm1188, %v1179, %v950
      %v1214 = vsel %vm1188, %v1181, %v952
      %v1216 = vsel %vm1188, %v1183, %v954
      %v1218 = vsel %vm1188, %v1185, %v956
      %v1220 = vsel %vm1188, %v1187, %v958
      %vm1221 = vcmask 228352
      %v1223 = vsel %vm1221, %v1190, %v960
      %v1225 = vsel %vm1221, %v1192, %v962
      %v1227 = vsel %vm1221, %v1194, %v964
      %v1229 = vsel %vm1221, %v1196, %v966
      %v1231 = vsel %vm1221, %v1198, %v968
      %v1233 = vsel %vm1221, %v1200, %v970
      %v1235 = vsel %vm1221, %v1202, %v972
      %v1237 = vsel %vm1221, %v1204, %v974
      %v1239 = vsel %vm1221, %v1206, %v976
      %v1241 = vsel %vm1221, %v1208, %v978
      %v1243 = vsel %vm1221, %v1210, %v980
      %v1245 = vsel %vm1221, %v1212, %v982
      %v1247 = vsel %vm1221, %v1214, %v984
      %v1249 = vsel %vm1221, %v1216, %v986
      %v1251 = vsel %vm1221, %v1218, %v988
      %v1253 = vsel %vm1221, %v1220, %v990
      %vm1254 = vcmask 261120
      %v1256 = vsel %vm1254, %v1223, %v992
      %v1258 = vsel %vm1254, %v1225, %v994
      %v1260 = vsel %vm1254, %v1227, %v996
      %v1262 = vsel %vm1254, %v1229, %v998
      %v1264 = vsel %vm1254, %v1231, %v1000
      %v1266 = vsel %vm1254, %v1233, %v1002
      %v1268 = vsel %vm1254, %v1235, %v1004
      %v1270 = vsel %vm1254, %v1237, %v1006
      %v1272 = vsel %vm1254, %v1239, %v1008
      %v1274 = vsel %vm1254, %v1241, %v1010
      %v1276 = vsel %vm1254, %v1243, %v1012
      %v1278 = vsel %vm1254, %v1245, %v1014
      %v1280 = vsel %vm1254, %v1247, %v1016
      %v1282 = vsel %vm1254, %v1249, %v1018
      %v1284 = vsel %vm1254, %v1251, %v1020
      %v1286 = vsel %vm1254, %v1253, %v1022
      %v1288 = vlaneseq
      %v1289 = vshrl.u32 %v1288, 7
      %v1290 = vsub.s32 0, %v1289
      %v1291 = vrot.slane %v236, %v1290
      %v1298 = vunpack.c.l.b16 %v226
      %v1299 = vunpack.c.l.b16 %v227
      %v1300 = vunpack.c.l.b16 %v228
      %v1301 = vunpack.c.l.b16 %v229
      %v1302 = vunpack.c.l.b16 %v230
      %v1303 = vpack.c.b16 %v1299, %v1298
      %v1304 = vpack.c.b16 %v1301, %v1300
      %v1305 = vpack.c.b16 %v1302, %v1302
      %vm1308 = vcmask 293888
      %v1309 = vsel %vm1308, %v1256, 0
      %v1311 = vsel %vm1308, %v1258, 0
      %v1313 = vsel %vm1308, %v1260, 0
      %v1315 = vsel %vm1308, %v1262, 0
      %v1317 = vsel %vm1308, %v1264, 0
      %v1319 = vsel %vm1308, %v1266, 0
      %v1321 = vsel %vm1308, %v1268, 0
      %v1323 = vsel %vm1308, %v1270, 0
      %v1325 = vsel %vm1308, %v1272, 0
      %v1327 = vsel %vm1308, %v1274, 0
      %v1329 = vsel %vm1308, %v1276, 0
      %v1331 = vsel %vm1308, %v1278, 0
      %v1333 = vsel %vm1308, %v1280, 0
      %v1335 = vsel %vm1308, %v1282, 0
      %v1337 = vsel %vm1308, %v1284, 0
      %v1339 = vsel %vm1308, %v1286, 0
      %vm1341 = vcmask 1041408
      %v1343 = vsel %vm1341, %v1305, 0
      %1345 = vmatprep.subr.bf16.mxu0 0
      %1346 = vmatpush1.bf16.msra.mxu0 %v1303
      %1347 = vmatprep.subr.bf16.mxu0 0
      %1348 = vmatpush1.bf16.msra.mxu0 %v1304
      %1349 = vmatprep.subr.bf16.mxu0 0
      %1350 = vmatpush1.bf16.msra.mxu0 %v1343
      %1351 = vmatprep.subr.bf16.mxu0 0
      %1352 = vmatpush1.bf16.msra.mxu0 0
      %1353 = vmatprep.subr.bf16.mxu0 0
      %1354 = vmatpush1.bf16.msra.mxu0 0
      %1355 = vmatprep.subr.bf16.mxu0 0
      %1356 = vmatpush1.bf16.msra.mxu0 0
      %1357 = vmatprep.subr.bf16.mxu0 0
      %1358 = vmatpush1.bf16.msra.mxu0 0
      %1359 = vmatprep.subr.bf16.mxu0 0
      %1360 = vmatpush1.bf16.msra.mxu0 0
      %1361 = vmatprep.subr.bf16.mxu0 0
      %1362 = vmatpush1.bf16.msra.mxu0 0
      %1363 = vmatprep.subr.bf16.mxu0 0
      %1364 = vmatpush1.bf16.msra.mxu0 0
      %1365 = vmatprep.subr.bf16.mxu0 0
      %1366 = vmatpush1.bf16.msra.mxu0 0
      %1367 = vmatprep.subr.bf16.mxu0 0
      %1368 = vmatpush1.bf16.msra.mxu0 0
      %1369 = vmatprep.subr.bf16.mxu0 0
      %1370 = vmatpush1.bf16.msra.mxu0 0
      %1371 = vmatprep.subr.bf16.mxu0 0
      %1372 = vmatpush1.bf16.msra.mxu0 0
      %1373 = vmatprep.subr.bf16.mxu0 0
      %1374 = vmatpush1.bf16.msra.mxu0 0
      %1375 = vmatprep.subr.bf16.mxu0 0
      %1376 = vmatpush1.bf16.msra.mxu0 0
      %1377 = vmatprep.mubr.bf16.mxu0 0
      %1378 = vmatmul.mubr.bf16.gmra.mrb[0].mxu0 %v1309
      %v1379 = vpop.f32.mrb[0].mxu0
      %v1380 = vadd.f32 %v1291, %v1379
      %v1381 = vpop.f32.mrb[0].mxu0
      %v1382 = vpop.f32.mrb[0].mxu0
      %v1383 = vadd.f32 %v1291, %v1382
      %v1384 = vpop.f32.mrb[0].mxu0
      %1385 = vmatprep.mubr.bf16.mxu0 0
      %1386 = vmatmul.mubr.bf16.gmra.mrb[0].mxu0 %v1311
      %v1387 = vpop.f32.mrb[0].mxu0
      %v1388 = vadd.f32 %v1291, %v1387
      %v1389 = vpop.f32.mrb[0].mxu0
      %v1390 = vpop.f32.mrb[0].mxu0
      %v1391 = vadd.f32 %v1291, %v1390
      %v1392 = vpop.f32.mrb[0].mxu0
      %1393 = vmatprep.mubr.bf16.mxu0 0
      %1394 = vmatmul.mubr.bf16.gmra.mrb[0].mxu0 %v1313
      %v1395 = vpop.f32.mrb[0].mxu0
      %v1396 = vadd.f32 %v1291, %v1395
      %v1397 = vpop.f32.mrb[0].mxu0
      %v1398 = vpop.f32.mrb[0].mxu0
      %v1399 = vadd.f32 %v1291, %v1398
      %v1400 = vpop.f32.mrb[0].mxu0
      %1401 = vmatprep.mubr.bf16.mxu0 0
      %1402 = vmatmul.mubr.bf16.gmra.mrb[0].mxu0 %v1315
      %v1403 = vpop.f32.mrb[0].mxu0
      %v1404 = vadd.f32 %v1291, %v1403
      %v1405 = vpop.f32.mrb[0].mxu0
      %v1406 = vpop.f32.mrb[0].mxu0
      %v1407 = vadd.f32 %v1291, %v1406
      %v1408 = vpop.f32.mrb[0].mxu0
      %1409 = vmatprep.mubr.bf16.mxu0 0
      %1410 = vmatmul.mubr.bf16.gmra.mrb[0].mxu0 %v1317
      %v1411 = vpop.f32.mrb[0].mxu0
      %v1412 = vadd.f32 %v1291, %v1411
      %v1413 = vpop.f32.mrb[0].mxu0
      %v1414 = vpop.f32.mrb[0].mxu0
      %v1415 = vadd.f32 %v1291, %v1414
      %v1416 = vpop.f32.mrb[0].mxu0
      %1417 = vmatprep.mubr.bf16.mxu0 0
      %1418 = vmatmul.mubr.bf16.gmra.mrb[0].mxu0 %v1319
      %v1419 = vpop.f32.mrb[0].mxu0
      %v1420 = vadd.f32 %v1291, %v1419
      %v1421 = vpop.f32.mrb[0].mxu0
      %v1422 = vpop.f32.mrb[0].mxu0
      %v1423 = vadd.f32 %v1291, %v1422
      %v1424 = vpop.f32.mrb[0].mxu0
      %1425 = vmatprep.mubr.bf16.mxu0 0
      %1426 = vmatmul.mubr.bf16.gmra.mrb[0].mxu0 %v1321
      %v1427 = vpop.f32.mrb[0].mxu0
      %v1428 = vadd.f32 %v1291, %v1427
      %v1429 = vpop.f32.mrb[0].mxu0
      %v1430 = vpop.f32.mrb[0].mxu0
      %v1431 = vadd.f32 %v1291, %v1430
      %v1432 = vpop.f32.mrb[0].mxu0
      %1433 = vmatprep.mubr.bf16.mxu0 0
      %1434 = vmatmul.mubr.bf16.gmra.mrb[0].mxu0 %v1323
      %v1435 = vpop.f32.mrb[0].mxu0
      %v1436 = vadd.f32 %v1291, %v1435
      %v1437 = vpop.f32.mrb[0].mxu0
      %v1438 = vpop.f32.mrb[0].mxu0
      %v1439 = vadd.f32 %v1291, %v1438
      %v1440 = vpop.f32.mrb[0].mxu0
      %1441 = vmatprep.mubr.bf16.mxu0 0
      %1442 = vmatmul.mubr.bf16.gmra.mrb[0].mxu0 %v1325
      %v1443 = vpop.f32.mrb[0].mxu0
      %v1444 = vadd.f32 %v1291, %v1443
      %v1445 = vpop.f32.mrb[0].mxu0
      %v1446 = vpop.f32.mrb[0].mxu0
      %v1447 = vadd.f32 %v1291, %v1446
      %v1448 = vpop.f32.mrb[0].mxu0
      %1449 = vmatprep.mubr.bf16.mxu0 0
      %1450 = vmatmul.mubr.bf16.gmra.mrb[0].mxu0 %v1327
      %v1451 = vpop.f32.mrb[0].mxu0
      %v1452 = vadd.f32 %v1291, %v1451
      %v1453 = vpop.f32.mrb[0].mxu0
      %v1454 = vpop.f32.mrb[0].mxu0
      %v1455 = vadd.f32 %v1291, %v1454
      %v1456 = vpop.f32.mrb[0].mxu0
      %1457 = vmatprep.mubr.bf16.mxu0 0
      %1458 = vmatmul.mubr.bf16.gmra.mrb[0].mxu0 %v1329
      %v1459 = vpop.f32.mrb[0].mxu0
      %v1460 = vadd.f32 %v1291, %v1459
      %v1461 = vpop.f32.mrb[0].mxu0
      %v1462 = vpop.f32.mrb[0].mxu0
      %v1463 = vadd.f32 %v1291, %v1462
      %v1464 = vpop.f32.mrb[0].mxu0
      %1465 = vmatprep.mubr.bf16.mxu0 0
      %1466 = vmatmul.mubr.bf16.gmra.mrb[0].mxu0 %v1331
      %v1467 = vpop.f32.mrb[0].mxu0
      %v1468 = vadd.f32 %v1291, %v1467
      %v1469 = vpop.f32.mrb[0].mxu0
      %v1470 = vpop.f32.mrb[0].mxu0
      %v1471 = vadd.f32 %v1291, %v1470
      %v1472 = vpop.f32.mrb[0].mxu0
      %1473 = vmatprep.mubr.bf16.mxu0 0
      %1474 = vmatmul.mubr.bf16.gmra.mrb[0].mxu0 %v1333
      %v1475 = vpop.f32.mrb[0].mxu0
      %v1476 = vadd.f32 %v1291, %v1475
      %v1477 = vpop.f32.mrb[0].mxu0
      %v1478 = vpop.f32.mrb[0].mxu0
      %v1479 = vadd.f32 %v1291, %v1478
      %v1480 = vpop.f32.mrb[0].mxu0
      %1481 = vmatprep.mubr.bf16.mxu0 0
      %1482 = vmatmul.mubr.bf16.gmra.mrb[0].mxu0 %v1335
      %v1483 = vpop.f32.mrb[0].mxu0
      %v1484 = vadd.f32 %v1291, %v1483
      %v1485 = vpop.f32.mrb[0].mxu0
      %v1486 = vpop.f32.mrb[0].mxu0
      %v1487 = vadd.f32 %v1291, %v1486
      %v1488 = vpop.f32.mrb[0].mxu0
      %1489 = vmatprep.mubr.bf16.mxu0 0
      %1490 = vmatmul.mubr.bf16.gmra.mrb[0].mxu0 %v1337
      %v1491 = vpop.f32.mrb[0].mxu0
      %v1492 = vadd.f32 %v1291, %v1491
      %v1493 = vpop.f32.mrb[0].mxu0
      %v1494 = vpop.f32.mrb[0].mxu0
      %v1495 = vadd.f32 %v1291, %v1494
      %v1496 = vpop.f32.mrb[0].mxu0
      %1497 = vmatprep.mubr.bf16.mxu0 0
      %1498 = vmatmul.mubr.bf16.gmra.mrb[0].mxu0 %v1339
      %v1499 = vpop.f32.mrb[0].mxu0
      %v1500 = vadd.f32 %v1291, %v1499
      %v1501 = vpop.f32.mrb[0].mxu0
      %v1502 = vpop.f32.mrb[0].mxu0
      %v1503 = vadd.f32 %v1291, %v1502
      %v1504 = vpop.f32.mrb[0].mxu0
      %1505 = vdwg.mxu0
      %v1506 = vmax.f32 %v1380, 0.0
      %v1507 = vmax.f32 %v1383, 0.0
      %v1508 = vmax.f32 %v1388, 0.0
      %v1509 = vmax.f32 %v1391, 0.0
      %v1510 = vmax.f32 %v1396, 0.0
      %v1511 = vmax.f32 %v1399, 0.0
      %v1512 = vmax.f32 %v1404, 0.0
      %v1513 = vmax.f32 %v1407, 0.0
      %v1514 = vmax.f32 %v1412, 0.0
      %v1515 = vmax.f32 %v1415, 0.0
      %v1516 = vmax.f32 %v1420, 0.0
      %v1517 = vmax.f32 %v1423, 0.0
      %v1518 = vmax.f32 %v1428, 0.0
      %v1519 = vmax.f32 %v1431, 0.0
      %v1520 = vmax.f32 %v1436, 0.0
      %v1521 = vmax.f32 %v1439, 0.0
      %v1522 = vmax.f32 %v1444, 0.0
      %v1523 = vmax.f32 %v1447, 0.0
      %v1524 = vmax.f32 %v1452, 0.0
      %v1525 = vmax.f32 %v1455, 0.0
      %v1526 = vmax.f32 %v1460, 0.0
      %v1527 = vmax.f32 %v1463, 0.0
      %v1528 = vmax.f32 %v1468, 0.0
      %v1529 = vmax.f32 %v1471, 0.0
      %v1530 = vmax.f32 %v1476, 0.0
      %v1531 = vmax.f32 %v1479, 0.0
      %v1532 = vmax.f32 %v1484, 0.0
      %v1533 = vmax.f32 %v1487, 0.0
      %v1534 = vmax.f32 %v1492, 0.0
      %v1535 = vmax.f32 %v1495, 0.0
      %v1536 = vmax.f32 %v1500, 0.0
      %v1537 = vmax.f32 %v1503, 0.0
      %v1538 = vpack.c.bf16 %v1507, %v1506
      %v1539 = vpack.c.bf16 %v1509, %v1508
      %v1540 = vpack.c.bf16 %v1511, %v1510
      %v1541 = vpack.c.bf16 %v1513, %v1512
      %v1542 = vpack.c.bf16 %v1515, %v1514
      %v1543 = vpack.c.bf16 %v1517, %v1516
      %v1544 = vpack.c.bf16 %v1519, %v1518
      %v1545 = vpack.c.bf16 %v1521, %v1520
      %v1546 = vpack.c.bf16 %v1523, %v1522
      %v1547 = vpack.c.bf16 %v1525, %v1524
      %v1548 = vpack.c.bf16 %v1527, %v1526
      %v1549 = vpack.c.bf16 %v1529, %v1528
      %v1550 = vpack.c.bf16 %v1531, %v1530
      %v1551 = vpack.c.bf16 %v1533, %v1532
      %v1552 = vpack.c.bf16 %v1535, %v1534
      %v1553 = vpack.c.bf16 %v1537, %v1536
      %v1555 = vshrl.u32 %v1538, 16
      %v1557 = vrot.slane %v1555, 7
      %v1558 = vshll.u32 %v1538, 16
      %v1560 = vor.u32 %v1557, %v1558
      %v1562 = vshrl.u32 %v1539, 16
      %v1564 = vrot.slane %v1562, 7
      %v1565 = vshll.u32 %v1539, 16
      %v1567 = vor.u32 %v1564, %v1565
      %v1569 = vshrl.u32 %v1540, 16
      %v1571 = vrot.slane %v1569, 7
      %v1572 = vshll.u32 %v1540, 16
      %v1574 = vor.u32 %v1571, %v1572
      %v1576 = vshrl.u32 %v1541, 16
      %v1578 = vrot.slane %v1576, 7
      %v1579 = vshll.u32 %v1541, 16
      %v1581 = vor.u32 %v1578, %v1579
      %v1583 = vshrl.u32 %v1542, 16
      %v1585 = vrot.slane %v1583, 7
      %v1586 = vshll.u32 %v1542, 16
      %v1588 = vor.u32 %v1585, %v1586
      %v1590 = vshrl.u32 %v1543, 16
      %v1592 = vrot.slane %v1590, 7
      %v1593 = vshll.u32 %v1543, 16
      %v1595 = vor.u32 %v1592, %v1593
      %v1597 = vshrl.u32 %v1544, 16
      %v1599 = vrot.slane %v1597, 7
      %v1600 = vshll.u32 %v1544, 16
      %v1602 = vor.u32 %v1599, %v1600
      %v1604 = vshrl.u32 %v1545, 16
      %v1606 = vrot.slane %v1604, 7
      %v1607 = vshll.u32 %v1545, 16
      %v1609 = vor.u32 %v1606, %v1607
      %v1611 = vshrl.u32 %v1546, 16
      %v1613 = vrot.slane %v1611, 7
      %v1614 = vshll.u32 %v1546, 16
      %v1616 = vor.u32 %v1613, %v1614
      %v1618 = vshrl.u32 %v1547, 16
      %v1620 = vrot.slane %v1618, 7
      %v1621 = vshll.u32 %v1547, 16
      %v1623 = vor.u32 %v1620, %v1621
      %v1625 = vshrl.u32 %v1548, 16
      %v1627 = vrot.slane %v1625, 7
      %v1628 = vshll.u32 %v1548, 16
      %v1630 = vor.u32 %v1627, %v1628
      %v1632 = vshrl.u32 %v1549, 16
      %v1634 = vrot.slane %v1632, 7
      %v1635 = vshll.u32 %v1549, 16
      %v1637 = vor.u32 %v1634, %v1635
      %v1639 = vshrl.u32 %v1550, 16
      %v1641 = vrot.slane %v1639, 7
      %v1642 = vshll.u32 %v1550, 16
      %v1644 = vor.u32 %v1641, %v1642
      %v1646 = vshrl.u32 %v1551, 16
      %v1648 = vrot.slane %v1646, 7
      %v1649 = vshll.u32 %v1551, 16
      %v1651 = vor.u32 %v1648, %v1649
      %v1653 = vshrl.u32 %v1552, 16
      %v1655 = vrot.slane %v1653, 7
      %v1656 = vshll.u32 %v1552, 16
      %v1658 = vor.u32 %v1655, %v1656
      %v1660 = vshrl.u32 %v1553, 16
      %v1662 = vrot.slane %v1660, 7
      %v1663 = vshll.u32 %v1553, 16
      %v1665 = vor.u32 %v1662, %v1663
      %v1698 = vsel %vm441, 0, %v1560
      %v1699 = vsel %vm441, 0, %v1567
      %v1700 = vsel %vm441, 0, %v1574
      %v1701 = vsel %vm441, 0, %v1581
      %v1702 = vsel %vm441, 0, %v1588
      %v1703 = vsel %vm441, 0, %v1595
      %v1704 = vsel %vm441, 0, %v1602
      %v1705 = vsel %vm441, 0, %v1609
      %v1706 = vsel %vm441, 0, %v1616
      %v1707 = vsel %vm441, 0, %v1623
      %v1708 = vsel %vm441, 0, %v1630
      %v1709 = vsel %vm441, 0, %v1637
      %v1710 = vsel %vm441, 0, %v1644
      %v1711 = vsel %vm441, 0, %v1651
      %v1712 = vsel %vm441, 0, %v1658
      %v1713 = vsel %vm441, 0, %v1665
      %v1714 = vsel %vm441, %v1557, 0
      %v1715 = vsel %vm441, %v1564, 0
      %v1716 = vsel %vm441, %v1571, 0
      %v1717 = vsel %vm441, %v1578, 0
      %v1718 = vsel %vm441, %v1585, 0
      %v1719 = vsel %vm441, %v1592, 0
      %v1720 = vsel %vm441, %v1599, 0
      %v1721 = vsel %vm441, %v1606, 0
      %v1722 = vsel %vm441, %v1613, 0
      %v1723 = vsel %vm441, %v1620, 0
      %v1724 = vsel %vm441, %v1627, 0
      %v1725 = vsel %vm441, %v1634, 0
      %v1726 = vsel %vm441, %v1641, 0
      %v1727 = vsel %vm441, %v1648, 0
      %v1728 = vsel %vm441, %v1655, 0
      %v1729 = vsel %vm441, %v1662, 0
      %v1731 = vshrl.u32 %v1698, 16
      %v1733 = vshll.u32 %v1698, 16
      %v1735 = vrot.slane %v1733, 1
      %v1736 = vor.u32 %v1731, %v1735
      %v1738 = vshll.u32 %v1714, 16
      %v1740 = vrot.slane %v1738, 1
      %v1741 = vsel %vm476, %v1736, %v1740
      %v1743 = vshrl.u32 %v1699, 16
      %v1745 = vshll.u32 %v1699, 16
      %v1747 = vrot.slane %v1745, 1
      %v1748 = vor.u32 %v1743, %v1747
      %v1750 = vshll.u32 %v1715, 16
      %v1752 = vrot.slane %v1750, 1
      %v1753 = vsel %vm476, %v1748, %v1752
      %v1755 = vshrl.u32 %v1700, 16
      %v1757 = vshll.u32 %v1700, 16
      %v1759 = vrot.slane %v1757, 1
      %v1760 = vor.u32 %v1755, %v1759
      %v1762 = vshll.u32 %v1716, 16
      %v1764 = vrot.slane %v1762, 1
      %v1765 = vsel %vm476, %v1760, %v1764
      %v1767 = vshrl.u32 %v1701, 16
      %v1769 = vshll.u32 %v1701, 16
      %v1771 = vrot.slane %v1769, 1
      %v1772 = vor.u32 %v1767, %v1771
      %v1774 = vshll.u32 %v1717, 16
      %v1776 = vrot.slane %v1774, 1
      %v1777 = vsel %vm476, %v1772, %v1776
      %v1779 = vshrl.u32 %v1702, 16
      %v1781 = vshll.u32 %v1702, 16
      %v1783 = vrot.slane %v1781, 1
      %v1784 = vor.u32 %v1779, %v1783
      %v1786 = vshll.u32 %v1718, 16
      %v1788 = vrot.slane %v1786, 1
      %v1789 = vsel %vm476, %v1784, %v1788
      %v1791 = vshrl.u32 %v1703, 16
      %v1793 = vshll.u32 %v1703, 16
      %v1795 = vrot.slane %v1793, 1
      %v1796 = vor.u32 %v1791, %v1795
      %v1798 = vshll.u32 %v1719, 16
      %v1800 = vrot.slane %v1798, 1
      %v1801 = vsel %vm476, %v1796, %v1800
      %v1803 = vshrl.u32 %v1704, 16
      %v1805 = vshll.u32 %v1704, 16
      %v1807 = vrot.slane %v1805, 1
      %v1808 = vor.u32 %v1803, %v1807
      %v1810 = vshll.u32 %v1720, 16
      %v1812 = vrot.slane %v1810, 1
      %v1813 = vsel %vm476, %v1808, %v1812
      %v1815 = vshrl.u32 %v1705, 16
      %v1817 = vshll.u32 %v1705, 16
      %v1819 = vrot.slane %v1817, 1
      %v1820 = vor.u32 %v1815, %v1819
      %v1822 = vshll.u32 %v1721, 16
      %v1824 = vrot.slane %v1822, 1
      %v1825 = vsel %vm476, %v1820, %v1824
      %v1827 = vshrl.u32 %v1706, 16
      %v1829 = vshll.u32 %v1706, 16
      %v1831 = vrot.slane %v1829, 1
      %v1832 = vor.u32 %v1827, %v1831
      %v1834 = vshll.u32 %v1722, 16
      %v1836 = vrot.slane %v1834, 1
      %v1837 = vsel %vm476, %v1832, %v1836
      %v1839 = vshrl.u32 %v1707, 16
      %v1841 = vshll.u32 %v1707, 16
      %v1843 = vrot.slane %v1841, 1
      %v1844 = vor.u32 %v1839, %v1843
      %v1846 = vshll.u32 %v1723, 16
      %v1848 = vrot.slane %v1846, 1
      %v1849 = vsel %vm476, %v1844, %v1848
      %v1851 = vshrl.u32 %v1708, 16
      %v1853 = vshll.u32 %v1708, 16
      %v1855 = vrot.slane %v1853, 1
      %v1856 = vor.u32 %v1851, %v1855
      %v1858 = vshll.u32 %v1724, 16
      %v1860 = vrot.slane %v1858, 1
      %v1861 = vsel %vm476, %v1856, %v1860
      %v1863 = vshrl.u32 %v1709, 16
      %v1865 = vshll.u32 %v1709, 16
      %v1867 = vrot.slane %v1865, 1
      %v1868 = vor.u32 %v1863, %v1867
      %v1870 = vshll.u32 %v1725, 16
      %v1872 = vrot.slane %v1870, 1
      %v1873 = vsel %vm476, %v1868, %v1872
      %v1875 = vshrl.u32 %v1710, 16
      %v1877 = vshll.u32 %v1710, 16
      %v1879 = vrot.slane %v1877, 1
      %v1880 = vor.u32 %v1875, %v1879
      %v1882 = vshll.u32 %v1726, 16
      %v1884 = vrot.slane %v1882, 1
      %v1885 = vsel %vm476, %v1880, %v1884
      %v1887 = vshrl.u32 %v1711, 16
      %v1889 = vshll.u32 %v1711, 16
      %v1891 = vrot.slane %v1889, 1
      %v1892 = vor.u32 %v1887, %v1891
      %v1894 = vshll.u32 %v1727, 16
      %v1896 = vrot.slane %v1894, 1
      %v1897 = vsel %vm476, %v1892, %v1896
      %v1899 = vshrl.u32 %v1712, 16
      %v1901 = vshll.u32 %v1712, 16
      %v1903 = vrot.slane %v1901, 1
      %v1904 = vor.u32 %v1899, %v1903
      %v1906 = vshll.u32 %v1728, 16
      %v1908 = vrot.slane %v1906, 1
      %v1909 = vsel %vm476, %v1904, %v1908
      %v1940 = vrot.slane %v1698, 1
      %v1941 = vrot.slane %v1714, 1
      %v1942 = vsel %vm701, %v1940, %v1941
      %v1943 = vrot.slane %v1699, 1
      %v1944 = vrot.slane %v1715, 1
      %v1945 = vsel %vm701, %v1943, %v1944
      %v1946 = vrot.slane %v1700, 1
      %v1947 = vrot.slane %v1716, 1
      %v1948 = vsel %vm701, %v1946, %v1947
      %v1949 = vrot.slane %v1701, 1
      %v1950 = vrot.slane %v1717, 1
      %v1951 = vsel %vm701, %v1949, %v1950
      %v1952 = vrot.slane %v1702, 1
      %v1953 = vrot.slane %v1718, 1
      %v1954 = vsel %vm701, %v1952, %v1953
      %v1955 = vrot.slane %v1703, 1
      %v1956 = vrot.slane %v1719, 1
      %v1957 = vsel %vm701, %v1955, %v1956
      %v1958 = vrot.slane %v1704, 1
      %v1959 = vrot.slane %v1720, 1
      %v1960 = vsel %vm701, %v1958, %v1959
      %v1961 = vrot.slane %v1705, 1
      %v1962 = vrot.slane %v1721, 1
      %v1963 = vsel %vm701, %v1961, %v1962
      %v1964 = vrot.slane %v1706, 1
      %v1965 = vrot.slane %v1722, 1
      %v1966 = vsel %vm701, %v1964, %v1965
      %v1967 = vrot.slane %v1707, 1
      %v1968 = vrot.slane %v1723, 1
      %v1969 = vsel %vm701, %v1967, %v1968
      %v1970 = vrot.slane %v1708, 1
      %v1971 = vrot.slane %v1724, 1
      %v1972 = vsel %vm701, %v1970, %v1971
      %v1973 = vrot.slane %v1709, 1
      %v1974 = vrot.slane %v1725, 1
      %v1975 = vsel %vm701, %v1973, %v1974
      %v1976 = vrot.slane %v1710, 1
      %v1977 = vrot.slane %v1726, 1
      %v1978 = vsel %vm701, %v1976, %v1977
      %v1979 = vrot.slane %v1711, 1
      %v1980 = vrot.slane %v1727, 1
      %v1981 = vsel %vm701, %v1979, %v1980
      %v1982 = vrot.slane %v1712, 1
      %v1983 = vrot.slane %v1728, 1
      %v1984 = vsel %vm701, %v1982, %v1983
      %v1986 = vshrl.u32 %v1713, 16
      %v1988 = vshll.u32 %v1713, 16
      %v1990 = vrot.slane %v1988, 1
      %v1991 = vor.u32 %v1986, %v1990
      %v1993 = vshll.u32 %v1729, 16
      %v1995 = vrot.slane %v1993, 1
      %v1996 = vsel %vm476, %v1991, %v1995
      %v1999 = vrot.slane %v1713, 1
      %v2000 = vrot.slane %v1729, 1
      %v2001 = vsel %vm701, %v1999, %v2000
      %2002 = vrot.lane.b32.xlu0 %v1741, 4
      %v2003 = vpop.permute.xlu0 %2002
      %2004 = vrot.lane.b32.xlu0 %v1753, 4
      %v2005 = vpop.permute.xlu0 %2004
      %2006 = vrot.lane.b32.xlu0 %v1765, 4
      %v2007 = vpop.permute.xlu0 %2006
      %2008 = vrot.lane.b32.xlu0 %v1777, 4
      %v2009 = vpop.permute.xlu0 %2008
      %2010 = vrot.lane.b32.xlu0 %v1789, 4
      %v2011 = vpop.permute.xlu0 %2010
      %2012 = vrot.lane.b32.xlu0 %v1801, 4
      %v2013 = vpop.permute.xlu0 %2012
      %2014 = vrot.lane.b32.xlu0 %v1813, 4
      %v2015 = vpop.permute.xlu0 %2014
      %2016 = vrot.lane.b32.xlu0 %v1825, 4
      %v2017 = vpop.permute.xlu0 %2016
      %2018 = vrot.lane.b32.xlu0 %v1837, 4
      %v2019 = vpop.permute.xlu0 %2018
      %2020 = vrot.lane.b32.xlu0 %v1849, 4
      %v2021 = vpop.permute.xlu0 %2020
      %2022 = vrot.lane.b32.xlu0 %v1861, 4
      %v2023 = vpop.permute.xlu0 %2022
      %2024 = vrot.lane.b32.xlu0 %v1873, 4
      %v2025 = vpop.permute.xlu0 %2024
      %2026 = vrot.lane.b32.xlu0 %v1885, 4
      %v2027 = vpop.permute.xlu0 %2026
      %2028 = vrot.lane.b32.xlu0 %v1897, 4
      %v2029 = vpop.permute.xlu0 %2028
      %2030 = vrot.lane.b32.xlu0 %v1909, 4
      %v2031 = vpop.permute.xlu0 %2030
      %2032 = vrot.lane.b32.xlu0 %v1942, 8
      %v2033 = vpop.permute.xlu0 %2032
      %2034 = vrot.lane.b32.xlu0 %v1945, 8
      %v2035 = vpop.permute.xlu0 %2034
      %2036 = vrot.lane.b32.xlu0 %v1948, 8
      %v2037 = vpop.permute.xlu0 %2036
      %2038 = vrot.lane.b32.xlu0 %v1951, 8
      %v2039 = vpop.permute.xlu0 %2038
      %2040 = vrot.lane.b32.xlu0 %v1954, 8
      %v2041 = vpop.permute.xlu0 %2040
      %2042 = vrot.lane.b32.xlu0 %v1957, 8
      %v2043 = vpop.permute.xlu0 %2042
      %2044 = vrot.lane.b32.xlu0 %v1960, 8
      %v2045 = vpop.permute.xlu0 %2044
      %2046 = vrot.lane.b32.xlu0 %v1963, 8
      %v2047 = vpop.permute.xlu0 %2046
      %2048 = vrot.lane.b32.xlu0 %v1966, 8
      %v2049 = vpop.permute.xlu0 %2048
      %2050 = vrot.lane.b32.xlu0 %v1969, 8
      %v2051 = vpop.permute.xlu0 %2050
      %2052 = vrot.lane.b32.xlu0 %v1972, 8
      %v2053 = vpop.permute.xlu0 %2052
      %2054 = vrot.lane.b32.xlu0 %v1975, 8
      %v2055 = vpop.permute.xlu0 %2054
      %2056 = vrot.lane.b32.xlu0 %v1978, 8
      %v2057 = vpop.permute.xlu0 %2056
      %2058 = vrot.lane.b32.xlu0 %v1981, 8
      %v2059 = vpop.permute.xlu0 %2058
      %2060 = vrot.lane.b32.xlu0 %v1984, 8
      %v2061 = vpop.permute.xlu0 %2060
      %2062 = vrot.lane.b32.xlu0 %v1698, 12
      %v2063 = vpop.permute.xlu0 %2062
      %2064 = vrot.lane.b32.xlu0 %v1699, 12
      %v2065 = vpop.permute.xlu0 %2064
      %2066 = vrot.lane.b32.xlu0 %v1700, 12
      %v2067 = vpop.permute.xlu0 %2066
      %2068 = vrot.lane.b32.xlu0 %v1701, 12
      %v2069 = vpop.permute.xlu0 %2068
      %2070 = vrot.lane.b32.xlu0 %v1702, 12
      %v2071 = vpop.permute.xlu0 %2070
      %2072 = vrot.lane.b32.xlu0 %v1703, 12
      %v2073 = vpop.permute.xlu0 %2072
      %2074 = vrot.lane.b32.xlu0 %v1704, 12
      %v2075 = vpop.permute.xlu0 %2074
      %2076 = vrot.lane.b32.xlu0 %v1705, 12
      %v2077 = vpop.permute.xlu0 %2076
      %2078 = vrot.lane.b32.xlu0 %v1706, 12
      %v2079 = vpop.permute.xlu0 %2078
      %2080 = vrot.lane.b32.xlu0 %v1707, 12
      %v2081 = vpop.permute.xlu0 %2080
      %2082 = vrot.lane.b32.xlu0 %v1708, 12
      %v2083 = vpop.permute.xlu0 %2082
      %2084 = vrot.lane.b32.xlu0 %v1709, 12
      %v2085 = vpop.permute.xlu0 %2084
      %2086 = vrot.lane.b32.xlu0 %v1710, 12
      %v2087 = vpop.permute.xlu0 %2086
      %2088 = vrot.lane.b32.xlu0 %v1711, 12
      %v2089 = vpop.permute.xlu0 %2088
      %2090 = vrot.lane.b32.xlu0 %v1712, 12
      %v2091 = vpop.permute.xlu0 %2090
      %2092 = vrot.lane.b32.xlu0 %v1713, 12
      %v2093 = vpop.permute.xlu0 %2092
      %2094 = vrot.lane.b32.xlu0 %v1741, 16
      %v2095 = vpop.permute.xlu0 %2094
      %2096 = vrot.lane.b32.xlu0 %v1753, 16
      %v2097 = vpop.permute.xlu0 %2096
      %2098 = vrot.lane.b32.xlu0 %v1765, 16
      %v2099 = vpop.permute.xlu0 %2098
      %2100 = vrot.lane.b32.xlu0 %v1777, 16
      %v2101 = vpop.permute.xlu0 %2100
      %2102 = vrot.lane.b32.xlu0 %v1789, 16
      %v2103 = vpop.permute.xlu0 %2102
      %2104 = vrot.lane.b32.xlu0 %v1801, 16
      %v2105 = vpop.permute.xlu0 %2104
      %2106 = vrot.lane.b32.xlu0 %v1813, 16
      %v2107 = vpop.permute.xlu0 %2106
      %2108 = vrot.lane.b32.xlu0 %v1825, 16
      %v2109 = vpop.permute.xlu0 %2108
      %2110 = vrot.lane.b32.xlu0 %v1837, 16
      %v2111 = vpop.permute.xlu0 %2110
      %2112 = vrot.lane.b32.xlu0 %v1849, 16
      %v2113 = vpop.permute.xlu0 %2112
      %2114 = vrot.lane.b32.xlu0 %v1861, 16
      %v2115 = vpop.permute.xlu0 %2114
      %2116 = vrot.lane.b32.xlu0 %v1873, 16
      %v2117 = vpop.permute.xlu0 %2116
      %2118 = vrot.lane.b32.xlu0 %v1885, 16
      %v2119 = vpop.permute.xlu0 %2118
      %2120 = vrot.lane.b32.xlu0 %v1897, 16
      %v2121 = vpop.permute.xlu0 %2120
      %2122 = vrot.lane.b32.xlu0 %v1909, 16
      %v2123 = vpop.permute.xlu0 %2122
      %2124 = vrot.lane.b32.xlu0 %v1996, 16
      %v2125 = vpop.permute.xlu0 %2124
      %2126 = vrot.lane.b32.xlu0 %v1942, 20
      %v2127 = vpop.permute.xlu0 %2126
      %2128 = vrot.lane.b32.xlu0 %v1945, 20
      %v2129 = vpop.permute.xlu0 %2128
      %2130 = vrot.lane.b32.xlu0 %v1948, 20
      %v2131 = vpop.permute.xlu0 %2130
      %2132 = vrot.lane.b32.xlu0 %v1951, 20
      %v2133 = vpop.permute.xlu0 %2132
      %2134 = vrot.lane.b32.xlu0 %v1954, 20
      %v2135 = vpop.permute.xlu0 %2134
      %2136 = vrot.lane.b32.xlu0 %v1957, 20
      %v2137 = vpop.permute.xlu0 %2136
      %2138 = vrot.lane.b32.xlu0 %v1960, 20
      %v2139 = vpop.permute.xlu0 %2138
      %2140 = vrot.lane.b32.xlu0 %v1963, 20
      %v2141 = vpop.permute.xlu0 %2140
      %2142 = vrot.lane.b32.xlu0 %v1966, 20
      %v2143 = vpop.permute.xlu0 %2142
      %2144 = vrot.lane.b32.xlu0 %v1969, 20
      %v2145 = vpop.permute.xlu0 %2144
      %2146 = vrot.lane.b32.xlu0 %v1972, 20
      %v2147 = vpop.permute.xlu0 %2146
      %2148 = vrot.lane.b32.xlu0 %v1975, 20
      %v2149 = vpop.permute.xlu0 %2148
      %2150 = vrot.lane.b32.xlu0 %v1978, 20
      %v2151 = vpop.permute.xlu0 %2150
      %2152 = vrot.lane.b32.xlu0 %v1981, 20
      %v2153 = vpop.permute.xlu0 %2152
      %2154 = vrot.lane.b32.xlu0 %v1984, 20
      %v2155 = vpop.permute.xlu0 %2154
      %2156 = vrot.lane.b32.xlu0 %v2001, 20
      %v2157 = vpop.permute.xlu0 %2156
      %2158 = vrot.lane.b32.xlu0 %v1699, 24
      %v2159 = vpop.permute.xlu0 %2158
      %2160 = vrot.lane.b32.xlu0 %v1700, 24
      %v2161 = vpop.permute.xlu0 %2160
      %2162 = vrot.lane.b32.xlu0 %v1701, 24
      %v2163 = vpop.permute.xlu0 %2162
      %2164 = vrot.lane.b32.xlu0 %v1702, 24
      %v2165 = vpop.permute.xlu0 %2164
      %2166 = vrot.lane.b32.xlu0 %v1703, 24
      %v2167 = vpop.permute.xlu0 %2166
      %2168 = vrot.lane.b32.xlu0 %v1704, 24
      %v2169 = vpop.permute.xlu0 %2168
      %2170 = vrot.lane.b32.xlu0 %v1705, 24
      %v2171 = vpop.permute.xlu0 %2170
      %2172 = vrot.lane.b32.xlu0 %v1706, 24
      %v2173 = vpop.permute.xlu0 %2172
      %2174 = vrot.lane.b32.xlu0 %v1707, 24
      %v2175 = vpop.permute.xlu0 %2174
      %2176 = vrot.lane.b32.xlu0 %v1708, 24
      %v2177 = vpop.permute.xlu0 %2176
      %2178 = vrot.lane.b32.xlu0 %v1709, 24
      %v2179 = vpop.permute.xlu0 %2178
      %2180 = vrot.lane.b32.xlu0 %v1710, 24
      %v2181 = vpop.permute.xlu0 %2180
      %2182 = vrot.lane.b32.xlu0 %v1711, 24
      %v2183 = vpop.permute.xlu0 %2182
      %2184 = vrot.lane.b32.xlu0 %v1712, 24
      %v2185 = vpop.permute.xlu0 %2184
      %2186 = vrot.lane.b32.xlu0 %v1713, 24
      %v2187 = vpop.permute.xlu0 %2186
      %2188 = vrot.lane.b32.xlu0 %v1753, 28
      %v2189 = vpop.permute.xlu0 %2188
      %2190 = vrot.lane.b32.xlu0 %v1765, 28
      %v2191 = vpop.permute.xlu0 %2190
      %2192 = vrot.lane.b32.xlu0 %v1777, 28
      %v2193 = vpop.permute.xlu0 %2192
      %2194 = vrot.lane.b32.xlu0 %v1789, 28
      %v2195 = vpop.permute.xlu0 %2194
      %2196 = vrot.lane.b32.xlu0 %v1801, 28
      %v2197 = vpop.permute.xlu0 %2196
      %2198 = vrot.lane.b32.xlu0 %v1813, 28
      %v2199 = vpop.permute.xlu0 %2198
      %2200 = vrot.lane.b32.xlu0 %v1825, 28
      %v2201 = vpop.permute.xlu0 %2200
      %2202 = vrot.lane.b32.xlu0 %v1837, 28
      %v2203 = vpop.permute.xlu0 %2202
      %2204 = vrot.lane.b32.xlu0 %v1849, 28
      %v2205 = vpop.permute.xlu0 %2204
      %2206 = vrot.lane.b32.xlu0 %v1861, 28
      %v2207 = vpop.permute.xlu0 %2206
      %2208 = vrot.lane.b32.xlu0 %v1873, 28
      %v2209 = vpop.permute.xlu0 %2208
      %2210 = vrot.lane.b32.xlu0 %v1885, 28
      %v2211 = vpop.permute.xlu0 %2210
      %2212 = vrot.lane.b32.xlu0 %v1897, 28
      %v2213 = vpop.permute.xlu0 %2212
      %2214 = vrot.lane.b32.xlu0 %v1909, 28
      %v2215 = vpop.permute.xlu0 %2214
      %2216 = vrot.lane.b32.xlu0 %v1996, 28
      %v2217 = vpop.permute.xlu0 %2216
      %2218 = vrot.lane.b32.xlu0 %v1945, 32
      %v2219 = vpop.permute.xlu0 %2218
      %2220 = vrot.lane.b32.xlu0 %v1948, 32
      %v2221 = vpop.permute.xlu0 %2220
      %2222 = vrot.lane.b32.xlu0 %v1951, 32
      %v2223 = vpop.permute.xlu0 %2222
      %2224 = vrot.lane.b32.xlu0 %v1954, 32
      %v2225 = vpop.permute.xlu0 %2224
      %2226 = vrot.lane.b32.xlu0 %v1957, 32
      %v2227 = vpop.permute.xlu0 %2226
      %2228 = vrot.lane.b32.xlu0 %v1960, 32
      %v2229 = vpop.permute.xlu0 %2228
      %2230 = vrot.lane.b32.xlu0 %v1963, 32
      %v2231 = vpop.permute.xlu0 %2230
      %2232 = vrot.lane.b32.xlu0 %v1966, 32
      %v2233 = vpop.permute.xlu0 %2232
      %2234 = vrot.lane.b32.xlu0 %v1969, 32
      %v2235 = vpop.permute.xlu0 %2234
      %2236 = vrot.lane.b32.xlu0 %v1972, 32
      %v2237 = vpop.permute.xlu0 %2236
      %2238 = vrot.lane.b32.xlu0 %v1975, 32
      %v2239 = vpop.permute.xlu0 %2238
      %2240 = vrot.lane.b32.xlu0 %v1978, 32
      %v2241 = vpop.permute.xlu0 %2240
      %2242 = vrot.lane.b32.xlu0 %v1981, 32
      %v2243 = vpop.permute.xlu0 %2242
      %2244 = vrot.lane.b32.xlu0 %v1984, 32
      %v2245 = vpop.permute.xlu0 %2244
      %2246 = vrot.lane.b32.xlu0 %v2001, 32
      %v2247 = vpop.permute.xlu0 %2246
      %v2249 = vsel %vm1023, %v1698, %v2003
      %v2251 = vsel %vm1023, %v1699, %v2005
      %v2253 = vsel %vm1023, %v1700, %v2007
      %v2255 = vsel %vm1023, %v1701, %v2009
      %v2257 = vsel %vm1023, %v1702, %v2011
      %v2259 = vsel %vm1023, %v1703, %v2013
      %v2261 = vsel %vm1023, %v1704, %v2015
      %v2263 = vsel %vm1023, %v1705, %v2017
      %v2265 = vsel %vm1023, %v1706, %v2019
      %v2267 = vsel %vm1023, %v1707, %v2021
      %v2269 = vsel %vm1023, %v1708, %v2023
      %v2271 = vsel %vm1023, %v1709, %v2025
      %v2273 = vsel %vm1023, %v1710, %v2027
      %v2275 = vsel %vm1023, %v1711, %v2029
      %v2277 = vsel %vm1023, %v1712, %v2031
      %v2279 = vsel %vm1056, %v2249, %v2033
      %v2281 = vsel %vm1056, %v2251, %v2035
      %v2283 = vsel %vm1056, %v2253, %v2037
      %v2285 = vsel %vm1056, %v2255, %v2039
      %v2287 = vsel %vm1056, %v2257, %v2041
      %v2289 = vsel %vm1056, %v2259, %v2043
      %v2291 = vsel %vm1056, %v2261, %v2045
      %v2293 = vsel %vm1056, %v2263, %v2047
      %v2295 = vsel %vm1056, %v2265, %v2049
      %v2297 = vsel %vm1056, %v2267, %v2051
      %v2299 = vsel %vm1056, %v2269, %v2053
      %v2301 = vsel %vm1056, %v2271, %v2055
      %v2303 = vsel %vm1056, %v2273, %v2057
      %v2305 = vsel %vm1056, %v2275, %v2059
      %v2307 = vsel %vm1056, %v2277, %v2061
      %v2309 = vsel %vm1089, %v1058, %v2063
      %v2311 = vsel %vm1089, %v2279, %v2065
      %v2313 = vsel %vm1089, %v2281, %v2067
      %v2315 = vsel %vm1089, %v2283, %v2069
      %v2317 = vsel %vm1089, %v2285, %v2071
      %v2319 = vsel %vm1089, %v2287, %v2073
      %v2321 = vsel %vm1089, %v2289, %v2075
      %v2323 = vsel %vm1089, %v2291, %v2077
      %v2325 = vsel %vm1089, %v2293, %v2079
      %v2327 = vsel %vm1089, %v2295, %v2081
      %v2329 = vsel %vm1089, %v2297, %v2083
      %v2331 = vsel %vm1089, %v2299, %v2085
      %v2333 = vsel %vm1089, %v2301, %v2087
      %v2335 = vsel %vm1089, %v2303, %v2089
      %v2337 = vsel %vm1089, %v2305, %v2091
      %v2339 = vsel %vm1089, %v2307, %v2093
      %v2341 = vsel %vm1122, %v2309, %v2095
      %v2343 = vsel %vm1122, %v2311, %v2097
      %v2345 = vsel %vm1122, %v2313, %v2099
      %v2347 = vsel %vm1122, %v2315, %v2101
      %v2349 = vsel %vm1122, %v2317, %v2103
      %v2351 = vsel %vm1122, %v2319, %v2105
      %v2353 = vsel %vm1122, %v2321, %v2107
      %v2355 = vsel %vm1122, %v2323, %v2109
      %v2357 = vsel %vm1122, %v2325, %v2111
      %v2359 = vsel %vm1122, %v2327, %v2113
      %v2361 = vsel %vm1122, %v2329, %v2115
      %v2363 = vsel %vm1122, %v2331, %v2117
      %v2365 = vsel %vm1122, %v2333, %v2119
      %v2367 = vsel %vm1122, %v2335, %v2121
      %v2369 = vsel %vm1122, %v2337, %v2123
      %v2371 = vsel %vm1122, %v2339, %v2125
      %v2373 = vsel %vm1155, %v2341, %v2127
      %v2375 = vsel %vm1155, %v2343, %v2129
      %v2377 = vsel %vm1155, %v2345, %v2131
      %v2379 = vsel %vm1155, %v2347, %v2133
      %v2381 = vsel %vm1155, %v2349, %v2135
      %v2383 = vsel %vm1155, %v2351, %v2137
      %v2385 = vsel %vm1155, %v2353, %v2139
      %v2387 = vsel %vm1155, %v2355, %v2141
      %v2389 = vsel %vm1155, %v2357, %v2143
      %v2391 = vsel %vm1155, %v2359, %v2145
      %v2393 = vsel %vm1155, %v2361, %v2147
      %v2395 = vsel %vm1155, %v2363, %v2149
      %v2397 = vsel %vm1155, %v2365, %v2151
      %v2399 = vsel %vm1155, %v2367, %v2153
      %v2401 = vsel %vm1155, %v2369, %v2155
      %v2403 = vsel %vm1155, %v2371, %v2157
      %v2405 = vsel %vm1188, %v2373, %v2159
      %v2407 = vsel %vm1188, %v2375, %v2161
      %v2409 = vsel %vm1188, %v2377, %v2163
      %v2411 = vsel %vm1188, %v2379, %v2165
      %v2413 = vsel %vm1188, %v2381, %v2167
      %v2415 = vsel %vm1188, %v2383, %v2169
      %v2417 = vsel %vm1188, %v2385, %v2171
      %v2419 = vsel %vm1188, %v2387, %v2173
      %v2421 = vsel %vm1188, %v2389, %v2175
      %v2423 = vsel %vm1188, %v2391, %v2177
      %v2425 = vsel %vm1188, %v2393, %v2179
      %v2427 = vsel %vm1188, %v2395, %v2181
      %v2429 = vsel %vm1188, %v2397, %v2183
      %v2431 = vsel %vm1188, %v2399, %v2185
      %v2433 = vsel %vm1188, %v2401, %v2187
      %v2434 = vsel %vm1188, %v2403, %v958
      %v2436 = vsel %vm1221, %v2405, %v2189
      %v2438 = vsel %vm1221, %v2407, %v2191
      %v2440 = vsel %vm1221, %v2409, %v2193
      %v2442 = vsel %vm1221, %v2411, %v2195
      %v2444 = vsel %vm1221, %v2413, %v2197
      %v2446 = vsel %vm1221, %v2415, %v2199
      %v2448 = vsel %vm1221, %v2417, %v2201
      %v2450 = vsel %vm1221, %v2419, %v2203
      %v2452 = vsel %vm1221, %v2421, %v2205
      %v2454 = vsel %vm1221, %v2423, %v2207
      %v2456 = vsel %vm1221, %v2425, %v2209
      %v2458 = vsel %vm1221, %v2427, %v2211
      %v2460 = vsel %vm1221, %v2429, %v2213
      %v2462 = vsel %vm1221, %v2431, %v2215
      %v2464 = vsel %vm1221, %v2433, %v2217
      %v2465 = vsel %vm1221, %v2434, %v990
      %v2467 = vsel %vm1254, %v2436, %v2219
      %v2469 = vsel %vm1254, %v2438, %v2221
      %v2471 = vsel %vm1254, %v2440, %v2223
      %v2473 = vsel %vm1254, %v2442, %v2225
      %v2475 = vsel %vm1254, %v2444, %v2227
      %v2477 = vsel %vm1254, %v2446, %v2229
      %v2479 = vsel %vm1254, %v2448, %v2231
      %v2481 = vsel %vm1254, %v2450, %v2233
      %v2483 = vsel %vm1254, %v2452, %v2235
      %v2485 = vsel %vm1254, %v2454, %v2237
      %v2487 = vsel %vm1254, %v2456, %v2239
      %v2489 = vsel %vm1254, %v2458, %v2241
      %v2491 = vsel %vm1254, %v2460, %v2243
      %v2493 = vsel %vm1254, %v2462, %v2245
      %v2495 = vsel %vm1254, %v2464, %v2247
      %v2496 = vsel %vm1254, %v2465, %v1022
      %v2498 = vlaneseq
      %v2499 = vshrl.u32 %v2498, 7
      %v2500 = vsub.s32 0, %v2499
      %v2501 = vrot.slane %v237, %v2500
      %v2508 = vunpack.c.l.b16 %v231
      %v2509 = vunpack.c.l.b16 %v232
      %v2510 = vunpack.c.l.b16 %v233
      %v2511 = vunpack.c.l.b16 %v234
      %v2512 = vunpack.c.l.b16 %v235
      %v2513 = vpack.c.b16 %v2509, %v2508
      %v2514 = vpack.c.b16 %v2511, %v2510
      %v2515 = vpack.c.b16 %v2512, %v2512
      %v2518 = vsel %vm1308, %v2467, 0
      %v2520 = vsel %vm1308, %v2469, 0
      %v2522 = vsel %vm1308, %v2471, 0
      %v2524 = vsel %vm1308, %v2473, 0
      %v2526 = vsel %vm1308, %v2475, 0
      %v2528 = vsel %vm1308, %v2477, 0
      %v2530 = vsel %vm1308, %v2479, 0
      %v2532 = vsel %vm1308, %v2481, 0
      %v2534 = vsel %vm1308, %v2483, 0
      %v2536 = vsel %vm1308, %v2485, 0
      %v2538 = vsel %vm1308, %v2487, 0
      %v2540 = vsel %vm1308, %v2489, 0
      %v2542 = vsel %vm1308, %v2491, 0
      %v2544 = vsel %vm1308, %v2493, 0
      %v2546 = vsel %vm1308, %v2495, 0
      %v2548 = vsel %vm1308, %v2496, 0
      %v2551 = vsel %vm1341, %v2515, 0
      %2553 = vmatprep.subr.bf16.mxu0 0
      %2554 = vmatpush1.bf16.msra.mxu0 %v2513
      %2555 = vmatprep.subr.bf16.mxu0 0
      %2556 = vmatpush1.bf16.msra.mxu0 %v2514
      %2557 = vmatprep.subr.bf16.mxu0 0
      %2558 = vmatpush1.bf16.msra.mxu0 %v2551
      %2559 = vmatprep.subr.bf16.mxu0 0
      %2560 = vmatpush1.bf16.msra.mxu0 0
      %2561 = vmatprep.subr.bf16.mxu0 0
      %2562 = vmatpush1.bf16.msra.mxu0 0
      %2563 = vmatprep.subr.bf16.mxu0 0
      %2564 = vmatpush1.bf16.msra.mxu0 0
      %2565 = vmatprep.subr.bf16.mxu0 0
      %2566 = vmatpush1.bf16.msra.mxu0 0
      %2567 = vmatprep.subr.bf16.mxu0 0
      %2568 = vmatpush1.bf16.msra.mxu0 0
      %2569 = vmatprep.subr.bf16.mxu0 0
      %2570 = vmatpush1.bf16.msra.mxu0 0
      %2571 = vmatprep.subr.bf16.mxu0 0
      %2572 = vmatpush1.bf16.msra.mxu0 0
      %2573 = vmatprep.subr.bf16.mxu0 0
      %2574 = vmatpush1.bf16.msra.mxu0 0
      %2575 = vmatprep.subr.bf16.mxu0 0
      %2576 = vmatpush1.bf16.msra.mxu0 0
      %2577 = vmatprep.subr.bf16.mxu0 0
      %2578 = vmatpush1.bf16.msra.mxu0 0
      %2579 = vmatprep.subr.bf16.mxu0 0
      %2580 = vmatpush1.bf16.msra.mxu0 0
      %2581 = vmatprep.subr.bf16.mxu0 0
      %2582 = vmatpush1.bf16.msra.mxu0 0
      %2583 = vmatprep.subr.bf16.mxu0 0
      %2584 = vmatpush1.bf16.msra.mxu0 0
      %2585 = vmatprep.mubr.bf16.mxu0 0
      %2586 = vmatmul.mubr.bf16.gmra.mrb[0].mxu0 %v2518
      %v2587 = vpop.f32.mrb[0].mxu0
      %v2588 = vadd.f32 %v2501, %v2587
      %v2589 = vpop.f32.mrb[0].mxu0
      %v2590 = vpop.f32.mrb[0].mxu0
      %v2591 = vadd.f32 %v2501, %v2590
      %v2592 = vpop.f32.mrb[0].mxu0
      %2593 = vmatprep.mubr.bf16.mxu0 0
      %2594 = vmatmul.mubr.bf16.gmra.mrb[0].mxu0 %v2520
      %v2595 = vpop.f32.mrb[0].mxu0
      %v2596 = vadd.f32 %v2501, %v2595
      %v2597 = vpop.f32.mrb[0].mxu0
      %v2598 = vpop.f32.mrb[0].mxu0
      %v2599 = vadd.f32 %v2501, %v2598
      %v2600 = vpop.f32.mrb[0].mxu0
      %2601 = vmatprep.mubr.bf16.mxu0 0
      %2602 = vmatmul.mubr.bf16.gmra.mrb[0].mxu0 %v2522
      %v2603 = vpop.f32.mrb[0].mxu0
      %v2604 = vadd.f32 %v2501, %v2603
      %v2605 = vpop.f32.mrb[0].mxu0
      %v2606 = vpop.f32.mrb[0].mxu0
      %v2607 = vadd.f32 %v2501, %v2606
      %v2608 = vpop.f32.mrb[0].mxu0
      %2609 = vmatprep.mubr.bf16.mxu0 0
      %2610 = vmatmul.mubr.bf16.gmra.mrb[0].mxu0 %v2524
      %v2611 = vpop.f32.mrb[0].mxu0
      %v2612 = vadd.f32 %v2501, %v2611
      %v2613 = vpop.f32.mrb[0].mxu0
      %v2614 = vpop.f32.mrb[0].mxu0
      %v2615 = vadd.f32 %v2501, %v2614
      %v2616 = vpop.f32.mrb[0].mxu0
      %2617 = vmatprep.mubr.bf16.mxu0 0
      %2618 = vmatmul.mubr.bf16.gmra.mrb[0].mxu0 %v2526
      %v2619 = vpop.f32.mrb[0].mxu0
      %v2620 = vadd.f32 %v2501, %v2619
      %v2621 = vpop.f32.mrb[0].mxu0
      %v2622 = vpop.f32.mrb[0].mxu0
      %v2623 = vadd.f32 %v2501, %v2622
      %v2624 = vpop.f32.mrb[0].mxu0
      %2625 = vmatprep.mubr.bf16.mxu0 0
      %2626 = vmatmul.mubr.bf16.gmra.mrb[0].mxu0 %v2528
      %v2627 = vpop.f32.mrb[0].mxu0
      %v2628 = vadd.f32 %v2501, %v2627
      %v2629 = vpop.f32.mrb[0].mxu0
      %v2630 = vpop.f32.mrb[0].mxu0
      %v2631 = vadd.f32 %v2501, %v2630
      %v2632 = vpop.f32.mrb[0].mxu0
      %2633 = vmatprep.mubr.bf16.mxu0 0
      %2634 = vmatmul.mubr.bf16.gmra.mrb[0].mxu0 %v2530
      %v2635 = vpop.f32.mrb[0].mxu0
      %v2636 = vadd.f32 %v2501, %v2635
      %v2637 = vpop.f32.mrb[0].mxu0
      %v2638 = vpop.f32.mrb[0].mxu0
      %v2639 = vadd.f32 %v2501, %v2638
      %v2640 = vpop.f32.mrb[0].mxu0
      %2641 = vmatprep.mubr.bf16.mxu0 0
      %2642 = vmatmul.mubr.bf16.gmra.mrb[0].mxu0 %v2532
      %v2643 = vpop.f32.mrb[0].mxu0
      %v2644 = vadd.f32 %v2501, %v2643
      %v2645 = vpop.f32.mrb[0].mxu0
      %v2646 = vpop.f32.mrb[0].mxu0
      %v2647 = vadd.f32 %v2501, %v2646
      %v2648 = vpop.f32.mrb[0].mxu0
      %2649 = vmatprep.mubr.bf16.mxu0 0
      %2650 = vmatmul.mubr.bf16.gmra.mrb[0].mxu0 %v2534
      %v2651 = vpop.f32.mrb[0].mxu0
      %v2652 = vadd.f32 %v2501, %v2651
      %v2653 = vpop.f32.mrb[0].mxu0
      %v2654 = vpop.f32.mrb[0].mxu0
      %v2655 = vadd.f32 %v2501, %v2654
      %v2656 = vpop.f32.mrb[0].mxu0
      %2657 = vmatprep.mubr.bf16.mxu0 0
      %2658 = vmatmul.mubr.bf16.gmra.mrb[0].mxu0 %v2536
      %v2659 = vpop.f32.mrb[0].mxu0
      %v2660 = vadd.f32 %v2501, %v2659
      %v2661 = vpop.f32.mrb[0].mxu0
      %v2662 = vpop.f32.mrb[0].mxu0
      %v2663 = vadd.f32 %v2501, %v2662
      %v2664 = vpop.f32.mrb[0].mxu0
      %2665 = vmatprep.mubr.bf16.mxu0 0
      %2666 = vmatmul.mubr.bf16.gmra.mrb[0].mxu0 %v2538
      %v2667 = vpop.f32.mrb[0].mxu0
      %v2668 = vadd.f32 %v2501, %v2667
      %v2669 = vpop.f32.mrb[0].mxu0
      %v2670 = vpop.f32.mrb[0].mxu0
      %v2671 = vadd.f32 %v2501, %v2670
      %v2672 = vpop.f32.mrb[0].mxu0
      %2673 = vmatprep.mubr.bf16.mxu0 0
      %2674 = vmatmul.mubr.bf16.gmra.mrb[0].mxu0 %v2540
      %v2675 = vpop.f32.mrb[0].mxu0
      %v2676 = vadd.f32 %v2501, %v2675
      %v2677 = vpop.f32.mrb[0].mxu0
      %v2678 = vpop.f32.mrb[0].mxu0
      %v2679 = vadd.f32 %v2501, %v2678
      %v2680 = vpop.f32.mrb[0].mxu0
      %2681 = vmatprep.mubr.bf16.mxu0 0
      %2682 = vmatmul.mubr.bf16.gmra.mrb[0].mxu0 %v2542
      %v2683 = vpop.f32.mrb[0].mxu0
      %v2684 = vadd.f32 %v2501, %v2683
      %v2685 = vpop.f32.mrb[0].mxu0
      %v2686 = vpop.f32.mrb[0].mxu0
      %v2687 = vadd.f32 %v2501, %v2686
      %v2688 = vpop.f32.mrb[0].mxu0
      %2689 = vmatprep.mubr.bf16.mxu0 0
      %2690 = vmatmul.mubr.bf16.gmra.mrb[0].mxu0 %v2544
      %v2691 = vpop.f32.mrb[0].mxu0
      %v2692 = vadd.f32 %v2501, %v2691
      %v2693 = vpop.f32.mrb[0].mxu0
      %v2694 = vpop.f32.mrb[0].mxu0
      %v2695 = vadd.f32 %v2501, %v2694
      %v2696 = vpop.f32.mrb[0].mxu0
      %2697 = vmatprep.mubr.bf16.mxu0 0
      %2698 = vmatmul.mubr.bf16.gmra.mrb[0].mxu0 %v2546
      %v2699 = vpop.f32.mrb[0].mxu0
      %v2700 = vadd.f32 %v2501, %v2699
      %v2701 = vpop.f32.mrb[0].mxu0
      %v2702 = vpop.f32.mrb[0].mxu0
      %v2703 = vadd.f32 %v2501, %v2702
      %v2704 = vpop.f32.mrb[0].mxu0
      %2705 = vmatprep.mubr.bf16.mxu0 0
      %2706 = vmatmul.mubr.bf16.gmra.mrb[0].mxu0 %v2548
      %v2707 = vpop.f32.mrb[0].mxu0
      %v2708 = vadd.f32 %v2501, %v2707
      %v2709 = vpop.f32.mrb[0].mxu0
      %v2710 = vpop.f32.mrb[0].mxu0
      %v2711 = vadd.f32 %v2501, %v2710
      %v2712 = vpop.f32.mrb[0].mxu0
      %2713 = vdwg.mxu0
      %v2714 = vadd.f32 %v238, %v2588
      %v2715 = vadd.f32 %v239, %v2591
      %v2716 = vadd.f32 %v240, %v2596
      %v2717 = vadd.f32 %v241, %v2599
      %v2718 = vadd.f32 %v242, %v2604
      %v2719 = vadd.f32 %v243, %v2607
      %v2720 = vadd.f32 %v244, %v2612
      %v2721 = vadd.f32 %v245, %v2615
      %v2722 = vadd.f32 %v246, %v2620
      %v2723 = vadd.f32 %v247, %v2623
      %v2724 = vadd.f32 %v248, %v2628
      %v2725 = vadd.f32 %v249, %v2631
      %v2726 = vadd.f32 %v250, %v2636
      %v2727 = vadd.f32 %v251, %v2639
      %v2728 = vadd.f32 %v252, %v2644
      %v2729 = vadd.f32 %v253, %v2647
      %v2730 = vadd.f32 %v254, %v2652
      %v2731 = vadd.f32 %v255, %v2655
      %v2732 = vadd.f32 %v256, %v2660
      %v2733 = vadd.f32 %v257, %v2663
      %v2734 = vadd.f32 %v258, %v2668
      %v2735 = vadd.f32 %v259, %v2671
      %v2736 = vadd.f32 %v260, %v2676
      %v2737 = vadd.f32 %v261, %v2679
      %v2738 = vadd.f32 %v262, %v2684
      %v2739 = vadd.f32 %v263, %v2687
      %v2740 = vadd.f32 %v264, %v2692
      %v2741 = vadd.f32 %v265, %v2695
      %v2742 = vadd.f32 %v266, %v2700
      %v2743 = vadd.f32 %v267, %v2703
      %v2744 = vadd.f32 %v268, %v2708
      %v2745 = vadd.f32 %v269, %v2711
      %2746 = vst.msk [vmem:[%s224] sm:$0xff] %vm1023, %v2714
      %2747 = vst.msk [vmem:[%s224 + $0x8] sm:$0xff] %vm1023, %v2715
      %2748 = vst.msk [vmem:[%s224 + $0x10] sm:$0xff] %vm1023, %v2716
      %2749 = vst.msk [vmem:[%s224 + $0x18] sm:$0xff] %vm1023, %v2717
      %2750 = vst.msk [vmem:[%s224 + $0x20] sm:$0xff] %vm1023, %v2718
      %2751 = vst.msk [vmem:[%s224 + $0x28] sm:$0xff] %vm1023, %v2719
      %2752 = vst.msk [vmem:[%s224 + $0x30] sm:$0xff] %vm1023, %v2720
      %2753 = vst.msk [vmem:[%s224 + $0x38] sm:$0xff] %vm1023, %v2721
      %2754 = vst.msk [vmem:[%s224 + $0x40] sm:$0xff] %vm1023, %v2722
      %2755 = vst.msk [vmem:[%s224 + $0x48] sm:$0xff] %vm1023, %v2723
      %2756 = vst.msk [vmem:[%s224 + $0x50] sm:$0xff] %vm1023, %v2724
      %2757 = vst.msk [vmem:[%s224 + $0x58] sm:$0xff] %vm1023, %v2725
      %2758 = vst.msk [vmem:[%s224 + $0x60] sm:$0xff] %vm1023, %v2726
      %2759 = vst.msk [vmem:[%s224 + $0x68] sm:$0xff] %vm1023, %v2727
      %2760 = vst.msk [vmem:[%s224 + $0x70] sm:$0xff] %vm1023, %v2728
      %2761 = vst.msk [vmem:[%s224 + $0x78] sm:$0xff] %vm1023, %v2729
      %2762 = vst.msk [vmem:[%s224 + $0x80] sm:$0xff] %vm1023, %v2730
      %2763 = vst.msk [vmem:[%s224 + $0x88] sm:$0xff] %vm1023, %v2731
      %2764 = vst.msk [vmem:[%s224 + $0x90] sm:$0xff] %vm1023, %v2732
      %2765 = vst.msk [vmem:[%s224 + $0x98] sm:$0xff] %vm1023, %v2733
      %2766 = vst.msk [vmem:[%s224 + $0xa0] sm:$0xff] %vm1023, %v2734
      %2767 = vst.msk [vmem:[%s224 + $0xa8] sm:$0xff] %vm1023, %v2735
      %2768 = vst.msk [vmem:[%s224 + $0xb0] sm:$0xff] %vm1023, %v2736
      %2769 = vst.msk [vmem:[%s224 + $0xb8] sm:$0xff] %vm1023, %v2737
      %2770 = vst.msk [vmem:[%s224 + $0xc0] sm:$0xff] %vm1023, %v2738
      %2771 = vst.msk [vmem:[%s224 + $0xc8] sm:$0xff] %vm1023, %v2739
      %2772 = vst.msk [vmem:[%s224 + $0xd0] sm:$0xff] %vm1023, %v2740
      %2773 = vst.msk [vmem:[%s224 + $0xd8] sm:$0xff] %vm1023, %v2741
      %2774 = vst.msk [vmem:[%s224 + $0xe0] sm:$0xff] %vm1023, %v2742
      %2775 = vst.msk [vmem:[%s224 + $0xe8] sm:$0xff] %vm1023, %v2743
      %2776 = vst.msk [vmem:[%s224 + $0xf0] sm:$0xff] %vm1023, %v2744
      %2777 = vst.msk [vmem:[%s224 + $0xf8] sm:$0xff] %vm1023, %v2745
      %p2778 = scmp.lt.s32.totalorder %s16, 1
      %s2779 = scalar_select %p2778, %s16, 1
      %s2780 = smul.addr %s2779, 32
      %s2781 = smul.addr %s2780, 8
      %s2782 = scalar_lea.vmem %s5, %s2781
      // Predicated region
      $region41: #{tpu_custom_call.1} parent=39 // pred_check
        %p2783 = pneg %p144
      $region42: #{tpu_custom_call.1} parent=39 // pred_check_branch
        %2785 = sbr.rel (%p2783) target = $region44
      $region43: #{tpu_custom_call.1} parent=39 // pred_region
        _
      $region44: #{tpu_custom_call.1} parent=39 // pred_fallthru
        _
    $region40: #{tpu_custom_call.1} parent=5 // pred_fallthru
      _
    %p2786 = scmp.le.s32.totalorder 2, %s11
    // Predicated region
    $region45: #{tpu_custom_call.1} parent=5 // pred_check
      %p2787 = pneg %p2786
    $region46: #{tpu_custom_call.1} parent=5 // pred_check_branch
      %2789 = sbr.rel (%p2787) target = $region48
    $region47: #{tpu_custom_call.1} parent=5 // pred_region
      %s2790 = ssub.s32 %s11, 2
      // Predicated region
      $region49: #{tpu_custom_call.1} parent=47 // pred_check
        %p2791 = pneg %p150
      $region50: #{tpu_custom_call.1} parent=47 // pred_check_branch
        %2793 = sbr.rel (%p2791) target = $region52
      $region51: #{tpu_custom_call.1} parent=47 // pred_region
        %p2794 = scmp.lt.s32.totalorder %s17, 1
        %s2795 = scalar_select %p2794, %s17, 1
        %s2796 = smul.addr %s2795, 32
        %s2797 = smul.addr %s2796, 8
        %s2798 = scalar_lea.vmem %s5, %s2797
      $region52: #{tpu_custom_call.1} parent=47 // pred_fallthru
        _
    $region48: #{tpu_custom_call.1} parent=5 // pred_fallthru
      _
  $region6: #{tpu_custom_call.1} parent=0 // loop_footer
    %s15 = sadd.s32 1, %s11
  $region7: #{tpu_custom_call.1} parent=0 // loop_footer_branch
    %10 = sbr.rel target = $region3
  $region8: #{tpu_custom_call.1} parent=0 // loop_exit
    _

</llo_original>
